<compile_context>
chip_gen: v7x
topology: tpu7x:2x2x1
jax: 0.10.0
libtpu: 0.0.40
codegen_flags: <defaults>
</compile_context>

<pallas_src>
import jax
import jax.numpy as jnp
from jax.experimental import pallas as pl
from jax.experimental.pallas import tpu as pltpu

EPS = 1e-5
TAPS = tuple((dy, dx) for dy in (-1, 0, 1) for dx in (-1, 0, 1))


def _roll_lanes(x, s):
    """Circular lane shift: result[r, p] = x[r, (p + s) % L]."""
    L = x.shape[1]
    s = s % L
    if s == 0:
        return x
    return pltpu.roll(x, shift=L - s, axis=1)


def _roll_rows(x, s):
    """Circular sublane (row) shift: result[r, p] = x[(r + s) % R, p]."""
    R = x.shape[0]
    s = s % R
    if s == 0:
        return x
    return pltpu.roll(x, shift=R - s, axis=0)


def make_resblock_kernel(N, C, H, W):
    NC, HW = N * C, H * W
    D = 2 * C - 1                          # number of channel "diagonals"
    diags = tuple(range(-(C - 1), C))
    inv_count = 1.0 / float(N * HW)

    def conv3x3(x, coef_ref, base, bias_col):
        """Same-padding 3x3 conv on lane-dense (N*C, H*W) data, VPU/XLU only.

        coef_ref[base + j*9 + t] holds (boundary-mask x pre-rolled channel-diagonal
        coefficient) planes, so the tap loop is pure lane-dense vld + mul + add and
        a single sublane roll per diagonal is applied after the tap sum.
        """
        shifted = [_roll_lanes(x, dy * W + dx) for (dy, dx) in TAPS]   # 8 lane rolls
        acc = None
        for j, d in enumerate(diags):
            part = None
            for t in range(9):
                term = coef_ref[base + j * 9 + t] * shifted[t]
                part = term if part is None else part + term
            part = _roll_rows(part, d)                                  # 1 roll per diag
            acc = part if acc is None else acc + part
        return acc + bias_col

    def bn_relu(z, gamma_col, beta_col):
        """Training-mode BatchNorm (global batch stats, biased var, eps=1e-5) + ReLU.

        Lane-reduce first, then combine batches on tiny (NC, 1) columns.
        """
        s = jnp.sum(z, axis=1, keepdims=True)            # (NC, 1) per-row sums
        q = jnp.sum(z * z, axis=1, keepdims=True)
        S, Q = s, q
        for k in range(1, N):                            # cross-batch combine (cheap)
            S = S + _roll_rows(s, k * C)
            Q = Q + _roll_rows(q, k * C)
        mean = S * inv_count
        var = jnp.maximum(Q * inv_count - mean * mean, 0.0)   # clamp cancellation
        scale = gamma_col * jax.lax.rsqrt(var + EPS)
        return jnp.maximum((z - mean) * scale + beta_col, 0.0)

    def kernel(x_ref, coef_ref, prm_ref, o_ref):
        x = x_ref[...]                                   # (N*C, H*W), lane-dense
        b1, g1, be1 = prm_ref[:, 0:1], prm_ref[:, 1:2], prm_ref[:, 2:3]
        b2, g2, be2 = prm_ref[:, 3:4], prm_ref[:, 4:5], prm_ref[:, 5:6]
        y = bn_relu(conv3x3(x, coef_ref, 0, b1), g1, be1)
        y = bn_relu(conv3x3(y, coef_ref, 9 * D, b2), g2, be2)
        o_ref[...] = jnp.maximum(x + y, 0.0)             # residual add + ReLU

    return kernel


def _coef_planes(w_oihw, N, C, H, W):
    """PyTorch conv weight (Cout, Cin, 3, 3) -> (9*(2C-1), N*C, H*W) planes.

    Plane [j*9 + t][r, p] = coef'[t, d_j][r] * mask_t[p], where the channel-diagonal
    coefficient is pre-rolled by -d (so the kernel rolls once per diagonal AFTER
    summing taps): coef'[t,d][r] = w_t[(r%C) - d, r%C] if 0 <= (r%C) - d < C else 0.
    mask_t zeroes the "same"-padding halo, which also kills lane-roll wraparound.
    """
    NC, HW = N * C, H * W
    w = w_oihw.astype(jnp.float32)
    r = jnp.arange(NC)
    ci = r % C                               # row carries the INPUT channel here
    p = jnp.arange(HW)
    hh = p // W
    ww = p % W
    planes = []
    for d in range(-(C - 1), C):
        co = ci - d                          # output channel this diagonal feeds
        ok = (co >= 0) & (co < C)
        co_c = jnp.clip(co, 0, C - 1)
        for (dy, dx) in TAPS:
            wt = w[:, :, dy + 1, dx + 1]     # (Cout, Cin)
            col = jnp.where(ok, wt[co_c, ci], 0.0)        # (NC,)
            m = jnp.ones((HW,), jnp.float32)
            if dy == -1:
                m = m * (hh >= 1).astype(jnp.float32)
            elif dy == 1:
                m = m * (hh <= H - 2).astype(jnp.float32)
            if dx == -1:
                m = m * (ww >= 1).astype(jnp.float32)
            elif dx == 1:
                m = m * (ww <= W - 2).astype(jnp.float32)
            planes.append(col[:, None] * m[None, :])
    return jnp.stack(planes, axis=0)         # (9*(2C-1), NC, HW)


def _per_row_col(v, N, C):
    """(C,) channel vector -> (N*C,) column with value v[row % C]."""
    return jnp.tile(v.astype(jnp.float32), N)


def resblock_forward(x_nchw, params):
    """x_nchw: (N, C, H, W) float32; params from init_params(). Returns NCHW."""
    N, C, H, W = x_nchw.shape
    NC, HW = N * C, H * W
    x2 = x_nchw.astype(jnp.float32).reshape(NC, HW)       # free reshape, no transpose

    # One packed coefficient-plane operand for both convs (boundary masks folded in).
    coef = jnp.concatenate([_coef_planes(params["w1"], N, C, H, W),
                            _coef_planes(params["w2"], N, C, H, W)], axis=0)
    # One packed per-row column operand: [b1, gamma1, beta1, b2, gamma2, beta2, 0, 0].
    prm = jnp.stack([_per_row_col(params["b1"], N, C),
                     _per_row_col(params["gamma1"], N, C),
                     _per_row_col(params["beta1"], N, C),
                     _per_row_col(params["b2"], N, C),
                     _per_row_col(params["gamma2"], N, C),
                     _per_row_col(params["beta2"], N, C),
                     jnp.zeros((NC,), jnp.float32),
                     jnp.zeros((NC,), jnp.float32)], axis=1)   # (NC, 8)

    vmem = pl.BlockSpec(memory_space=pltpu.MemorySpace.VMEM)
    out2 = pl.pallas_call(
        make_resblock_kernel(N, C, H, W),
        out_shape=jax.ShapeDtypeStruct((NC, HW), jnp.float32),
        in_specs=[vmem, vmem, vmem],
        out_specs=vmem,
        compiler_params=pltpu.CompilerParams(
            vmem_limit_bytes=32 * 1024 * 1024),            # explicit budget, fits all chips
    )(x2, coef, prm)

    return out2.reshape(N, C, H, W)                        # free reshape back to NCHW


def init_params(key, in_planes, planes):
    assert in_planes == planes, "stride=1 residual add needs in_planes == planes"
    k1, k2, k3, k4 = jax.random.split(key, 4)
    fan1 = in_planes * 9
    fan2 = planes * 9
    return {
        "w1": jax.random.uniform(k1, (planes, in_planes, 3, 3), jnp.float32,
                                 -1.0, 1.0) / jnp.sqrt(fan1),
        "b1": jax.random.uniform(k2, (planes,), jnp.float32,
                                 -1.0, 1.0) / jnp.sqrt(fan1),
        "w2": jax.random.uniform(k3, (planes, planes, 3, 3), jnp.float32,
                                 -1.0, 1.0) / jnp.sqrt(fan2),
        "b2": jax.random.uniform(k4, (planes,), jnp.float32,
                                 -1.0, 1.0) / jnp.sqrt(fan2),
        "gamma1": jnp.ones((planes,), jnp.float32),
        "beta1": jnp.zeros((planes,), jnp.float32),
        "gamma2": jnp.ones((planes,), jnp.float32),
        "beta2": jnp.zeros((planes,), jnp.float32),
    }


def _reference(x_nchw, params):
    """Pure-JAX reference (lax.conv) mirroring PyTorch train-mode semantics, NCHW."""
    def conv(x, w, b):
        y = jax.lax.conv_general_dilated(
            x, w, window_strides=(1, 1), padding=((1, 1), (1, 1)),
            dimension_numbers=("NCHW", "OIHW", "NCHW"))
        return y + b[None, :, None, None]

    def bn(z, gamma, beta):
        mean = jnp.mean(z, axis=(0, 2, 3), keepdims=True)
        var = jnp.mean((z - mean) ** 2, axis=(0, 2, 3), keepdims=True)
        return (z - mean) * jax.lax.rsqrt(var + EPS) \
            * gamma[None, :, None, None] + beta[None, :, None, None]

    y = jax.nn.relu(bn(conv(x_nchw, params["w1"], params["b1"]),
                       params["gamma1"], params["beta1"]))
    y = jax.nn.relu(bn(conv(y, params["w2"], params["b2"]),
                       params["gamma2"], params["beta2"]))
    return jax.nn.relu(x_nchw + y)


if __name__ == "__main__":
    key = jax.random.PRNGKey(0)
    kx, kp = jax.random.split(key)

    N, C, H, W = 2, 4, 16, 16          # in_planes = planes = 4, stride = 1
    x = jax.random.normal(kx, (N, C, H, W), jnp.float32)
    params = init_params(kp, C, C)

    out = resblock_forward(x, params)
    out = jax.block_until_ready(out)

    ref = _reference(x, params)
    assert out.shape == (N, C, H, W)
    assert jnp.allclose(out, ref, atol=1e-4, rtol=1e-4), "mismatch vs reference"

    print("KERNEL_OK")
</pallas_src>

<mosaic_0001>
module attributes {stable_mosaic.version = 11 : i64} {
  func.func @kernel(%arg0: memref<8x256xf32, #tpu.memory_space<vmem>>, %arg1: memref<126x8x256xf32, #tpu.memory_space<vmem>>, %arg2: memref<8x8xf32, #tpu.memory_space<vmem>>, %arg3: memref<8x256xf32, #tpu.memory_space<vmem>>) attributes {dimension_semantics = [], scalar_prefetch = 0 : i64, scratch_operands = 0 : i64, tpu.core_type = #tpu.core_type<tc>} {
    %c0 = arith.constant 0 : index
    %c0_0 = arith.constant 0 : index
    %0 = vector.load %arg0[%c0, %c0_0] : memref<8x256xf32, #tpu.memory_space<vmem>>, vector<8x256xf32>
    %c0_1 = arith.constant 0 : index
    %c0_2 = arith.constant 0 : index
    %1 = vector.load %arg2[%c0_1, %c0_2] : memref<8x8xf32, #tpu.memory_space<vmem>>, vector<8x1xf32>
    %c0_3 = arith.constant 0 : index
    %c1 = arith.constant 1 : index
    %2 = vector.load %arg2[%c0_3, %c1] : memref<8x8xf32, #tpu.memory_space<vmem>>, vector<8x1xf32>
    %c0_4 = arith.constant 0 : index
    %c2 = arith.constant 2 : index
    %3 = vector.load %arg2[%c0_4, %c2] : memref<8x8xf32, #tpu.memory_space<vmem>>, vector<8x1xf32>
    %c0_5 = arith.constant 0 : index
    %c3 = arith.constant 3 : index
    %4 = vector.load %arg2[%c0_5, %c3] : memref<8x8xf32, #tpu.memory_space<vmem>>, vector<8x1xf32>
    %c0_6 = arith.constant 0 : index
    %c4 = arith.constant 4 : index
    %5 = vector.load %arg2[%c0_6, %c4] : memref<8x8xf32, #tpu.memory_space<vmem>>, vector<8x1xf32>
    %c0_7 = arith.constant 0 : index
    %c5 = arith.constant 5 : index
    %6 = vector.load %arg2[%c0_7, %c5] : memref<8x8xf32, #tpu.memory_space<vmem>>, vector<8x1xf32>
    %c17_i32 = arith.constant 17 : i32
    %7 = tpu.dynamic_rotate %0 by %c17_i32 dim 1 : vector<8x256xf32>, i32 -> vector<8x256xf32>
    %c16_i32 = arith.constant 16 : i32
    %8 = tpu.dynamic_rotate %0 by %c16_i32 dim 1 : vector<8x256xf32>, i32 -> vector<8x256xf32>
    %c15_i32 = arith.constant 15 : i32
    %9 = tpu.dynamic_rotate %0 by %c15_i32 dim 1 : vector<8x256xf32>, i32 -> vector<8x256xf32>
    %c1_i32 = arith.constant 1 : i32
    %10 = tpu.dynamic_rotate %0 by %c1_i32 dim 1 : vector<8x256xf32>, i32 -> vector<8x256xf32>
    %c255_i32 = arith.constant 255 : i32
    %11 = tpu.dynamic_rotate %0 by %c255_i32 dim 1 : vector<8x256xf32>, i32 -> vector<8x256xf32>
    %c241_i32 = arith.constant 241 : i32
    %12 = tpu.dynamic_rotate %0 by %c241_i32 dim 1 : vector<8x256xf32>, i32 -> vector<8x256xf32>
    %c240_i32 = arith.constant 240 : i32
    %13 = tpu.dynamic_rotate %0 by %c240_i32 dim 1 : vector<8x256xf32>, i32 -> vector<8x256xf32>
    %c239_i32 = arith.constant 239 : i32
    %14 = tpu.dynamic_rotate %0 by %c239_i32 dim 1 : vector<8x256xf32>, i32 -> vector<8x256xf32>
    %c0_8 = arith.constant 0 : index
    %c0_9 = arith.constant 0 : index
    %c0_10 = arith.constant 0 : index
    %15 = vector.load %arg1[%c0_8, %c0_9, %c0_10] : memref<126x8x256xf32, #tpu.memory_space<vmem>>, vector<1x8x256xf32>
    %16 = vector.shape_cast %15 : vector<1x8x256xf32> to vector<8x256xf32>
    %17 = arith.mulf %16, %7 : vector<8x256xf32>
    %c1_11 = arith.constant 1 : index
    %c0_12 = arith.constant 0 : index
    %c0_13 = arith.constant 0 : index
    %18 = vector.load %arg1[%c1_11, %c0_12, %c0_13] : memref<126x8x256xf32, #tpu.memory_space<vmem>>, vector<1x8x256xf32>
    %19 = vector.shape_cast %18 : vector<1x8x256xf32> to vector<8x256xf32>
    %20 = arith.mulf %19, %8 : vector<8x256xf32>
    %21 = arith.addf %17, %20 : vector<8x256xf32>
    %c2_14 = arith.constant 2 : index
    %c0_15 = arith.constant 0 : index
    %c0_16 = arith.constant 0 : index
    %22 = vector.load %arg1[%c2_14, %c0_15, %c0_16] : memref<126x8x256xf32, #tpu.memory_space<vmem>>, vector<1x8x256xf32>
    %23 = vector.shape_cast %22 : vector<1x8x256xf32> to vector<8x256xf32>
    %24 = arith.mulf %23, %9 : vector<8x256xf32>
    %25 = arith.addf %21, %24 : vector<8x256xf32>
    %c3_17 = arith.constant 3 : index
    %c0_18 = arith.constant 0 : index
    %c0_19 = arith.constant 0 : index
    %26 = vector.load %arg1[%c3_17, %c0_18, %c0_19] : memref<126x8x256xf32, #tpu.memory_space<vmem>>, vector<1x8x256xf32>
    %27 = vector.shape_cast %26 : vector<1x8x256xf32> to vector<8x256xf32>
    %28 = arith.mulf %27, %10 : vector<8x256xf32>
    %29 = arith.addf %25, %28 : vector<8x256xf32>
    %c4_20 = arith.constant 4 : index
    %c0_21 = arith.constant 0 : index
    %c0_22 = arith.constant 0 : index
    %30 = vector.load %arg1[%c4_20, %c0_21, %c0_22] : memref<126x8x256xf32, #tpu.memory_space<vmem>>, vector<1x8x256xf32>
    %31 = vector.shape_cast %30 : vector<1x8x256xf32> to vector<8x256xf32>
    %32 = arith.mulf %31, %0 : vector<8x256xf32>
    %33 = arith.addf %29, %32 : vector<8x256xf32>
    %c5_23 = arith.constant 5 : index
    %c0_24 = arith.constant 0 : index
    %c0_25 = arith.constant 0 : index
    %34 = vector.load %arg1[%c5_23, %c0_24, %c0_25] : memref<126x8x256xf32, #tpu.memory_space<vmem>>, vector<1x8x256xf32>
    %35 = vector.shape_cast %34 : vector<1x8x256xf32> to vector<8x256xf32>
    %36 = arith.mulf %35, %11 : vector<8x256xf32>
    %37 = arith.addf %33, %36 : vector<8x256xf32>
    %c6 = arith.constant 6 : index
    %c0_26 = arith.constant 0 : index
    %c0_27 = arith.constant 0 : index
    %38 = vector.load %arg1[%c6, %c0_26, %c0_27] : memref<126x8x256xf32, #tpu.memory_space<vmem>>, vector<1x8x256xf32>
    %39 = vector.shape_cast %38 : vector<1x8x256xf32> to vector<8x256xf32>
    %40 = arith.mulf %39, %12 : vector<8x256xf32>
    %41 = arith.addf %37, %40 : vector<8x256xf32>
    %c7 = arith.constant 7 : index
    %c0_28 = arith.constant 0 : index
    %c0_29 = arith.constant 0 : index
    %42 = vector.load %arg1[%c7, %c0_28, %c0_29] : memref<126x8x256xf32, #tpu.memory_space<vmem>>, vector<1x8x256xf32>
    %43 = vector.shape_cast %42 : vector<1x8x256xf32> to vector<8x256xf32>
    %44 = arith.mulf %43, %13 : vector<8x256xf32>
    %45 = arith.addf %41, %44 : vector<8x256xf32>
    %c8 = arith.constant 8 : index
    %c0_30 = arith.constant 0 : index
    %c0_31 = arith.constant 0 : index
    %46 = vector.load %arg1[%c8, %c0_30, %c0_31] : memref<126x8x256xf32, #tpu.memory_space<vmem>>, vector<1x8x256xf32>
    %47 = vector.shape_cast %46 : vector<1x8x256xf32> to vector<8x256xf32>
    %48 = arith.mulf %47, %14 : vector<8x256xf32>
    %49 = arith.addf %45, %48 : vector<8x256xf32>
    %c3_i32 = arith.constant 3 : i32
    %50 = tpu.dynamic_rotate %49 by %c3_i32 dim 0 : vector<8x256xf32>, i32 -> vector<8x256xf32>
    %c9 = arith.constant 9 : index
    %c0_32 = arith.constant 0 : index
    %c0_33 = arith.constant 0 : index
    %51 = vector.load %arg1[%c9, %c0_32, %c0_33] : memref<126x8x256xf32, #tpu.memory_space<vmem>>, vector<1x8x256xf32>
    %52 = vector.shape_cast %51 : vector<1x8x256xf32> to vector<8x256xf32>
    %53 = arith.mulf %52, %7 : vector<8x256xf32>
    %c10 = arith.constant 10 : index
    %c0_34 = arith.constant 0 : index
    %c0_35 = arith.constant 0 : index
    %54 = vector.load %arg1[%c10, %c0_34, %c0_35] : memref<126x8x256xf32, #tpu.memory_space<vmem>>, vector<1x8x256xf32>
    %55 = vector.shape_cast %54 : vector<1x8x256xf32> to vector<8x256xf32>
    %56 = arith.mulf %55, %8 : vector<8x256xf32>
    %57 = arith.addf %53, %56 : vector<8x256xf32>
    %c11 = arith.constant 11 : index
    %c0_36 = arith.constant 0 : index
    %c0_37 = arith.constant 0 : index
    %58 = vector.load %arg1[%c11, %c0_36, %c0_37] : memref<126x8x256xf32, #tpu.memory_space<vmem>>, vector<1x8x256xf32>
    %59 = vector.shape_cast %58 : vector<1x8x256xf32> to vector<8x256xf32>
    %60 = arith.mulf %59, %9 : vector<8x256xf32>
    %61 = arith.addf %57, %60 : vector<8x256xf32>
    %c12 = arith.constant 12 : index
    %c0_38 = arith.constant 0 : index
    %c0_39 = arith.constant 0 : index
    %62 = vector.load %arg1[%c12, %c0_38, %c0_39] : memref<126x8x256xf32, #tpu.memory_space<vmem>>, vector<1x8x256xf32>
    %63 = vector.shape_cast %62 : vector<1x8x256xf32> to vector<8x256xf32>
    %64 = arith.mulf %63, %10 : vector<8x256xf32>
    %65 = arith.addf %61, %64 : vector<8x256xf32>
    %c13 = arith.constant 13 : index
    %c0_40 = arith.constant 0 : index
    %c0_41 = arith.constant 0 : index
    %66 = vector.load %arg1[%c13, %c0_40, %c0_41] : memref<126x8x256xf32, #tpu.memory_space<vmem>>, vector<1x8x256xf32>
    %67 = vector.shape_cast %66 : vector<1x8x256xf32> to vector<8x256xf32>
    %68 = arith.mulf %67, %0 : vector<8x256xf32>
    %69 = arith.addf %65, %68 : vector<8x256xf32>
    %c14 = arith.constant 14 : index
    %c0_42 = arith.constant 0 : index
    %c0_43 = arith.constant 0 : index
    %70 = vector.load %arg1[%c14, %c0_42, %c0_43] : memref<126x8x256xf32, #tpu.memory_space<vmem>>, vector<1x8x256xf32>
    %71 = vector.shape_cast %70 : vector<1x8x256xf32> to vector<8x256xf32>
    %72 = arith.mulf %71, %11 : vector<8x256xf32>
    %73 = arith.addf %69, %72 : vector<8x256xf32>
    %c15 = arith.constant 15 : index
    %c0_44 = arith.constant 0 : index
    %c0_45 = arith.constant 0 : index
    %74 = vector.load %arg1[%c15, %c0_44, %c0_45] : memref<126x8x256xf32, #tpu.memory_space<vmem>>, vector<1x8x256xf32>
    %75 = vector.shape_cast %74 : vector<1x8x256xf32> to vector<8x256xf32>
    %76 = arith.mulf %75, %12 : vector<8x256xf32>
    %77 = arith.addf %73, %76 : vector<8x256xf32>
    %c16 = arith.constant 16 : index
    %c0_46 = arith.constant 0 : index
    %c0_47 = arith.constant 0 : index
    %78 = vector.load %arg1[%c16, %c0_46, %c0_47] : memref<126x8x256xf32, #tpu.memory_space<vmem>>, vector<1x8x256xf32>
    %79 = vector.shape_cast %78 : vector<1x8x256xf32> to vector<8x256xf32>
    %80 = arith.mulf %79, %13 : vector<8x256xf32>
    %81 = arith.addf %77, %80 : vector<8x256xf32>
    %c17 = arith.constant 17 : index
    %c0_48 = arith.constant 0 : index
    %c0_49 = arith.constant 0 : index
    %82 = vector.load %arg1[%c17, %c0_48, %c0_49] : memref<126x8x256xf32, #tpu.memory_space<vmem>>, vector<1x8x256xf32>
    %83 = vector.shape_cast %82 : vector<1x8x256xf32> to vector<8x256xf32>
    %84 = arith.mulf %83, %14 : vector<8x256xf32>
    %85 = arith.addf %81, %84 : vector<8x256xf32>
    %c2_i32 = arith.constant 2 : i32
    %86 = tpu.dynamic_rotate %85 by %c2_i32 dim 0 : vector<8x256xf32>, i32 -> vector<8x256xf32>
    %87 = arith.addf %50, %86 : vector<8x256xf32>
    %c18 = arith.constant 18 : index
    %c0_50 = arith.constant 0 : index
    %c0_51 = arith.constant 0 : index
    %88 = vector.load %arg1[%c18, %c0_50, %c0_51] : memref<126x8x256xf32, #tpu.memory_space<vmem>>, vector<1x8x256xf32>
    %89 = vector.shape_cast %88 : vector<1x8x256xf32> to vector<8x256xf32>
    %90 = arith.mulf %89, %7 : vector<8x256xf32>
    %c19 = arith.constant 19 : index
    %c0_52 = arith.constant 0 : index
    %c0_53 = arith.constant 0 : index
    %91 = vector.load %arg1[%c19, %c0_52, %c0_53] : memref<126x8x256xf32, #tpu.memory_space<vmem>>, vector<1x8x256xf32>
    %92 = vector.shape_cast %91 : vector<1x8x256xf32> to vector<8x256xf32>
    %93 = arith.mulf %92, %8 : vector<8x256xf32>
    %94 = arith.addf %90, %93 : vector<8x256xf32>
    %c20 = arith.constant 20 : index
    %c0_54 = arith.constant 0 : index
    %c0_55 = arith.constant 0 : index
    %95 = vector.load %arg1[%c20, %c0_54, %c0_55] : memref<126x8x256xf32, #tpu.memory_space<vmem>>, vector<1x8x256xf32>
    %96 = vector.shape_cast %95 : vector<1x8x256xf32> to vector<8x256xf32>
    %97 = arith.mulf %96, %9 : vector<8x256xf32>
    %98 = arith.addf %94, %97 : vector<8x256xf32>
    %c21 = arith.constant 21 : index
    %c0_56 = arith.constant 0 : index
    %c0_57 = arith.constant 0 : index
    %99 = vector.load %arg1[%c21, %c0_56, %c0_57] : memref<126x8x256xf32, #tpu.memory_space<vmem>>, vector<1x8x256xf32>
    %100 = vector.shape_cast %99 : vector<1x8x256xf32> to vector<8x256xf32>
    %101 = arith.mulf %100, %10 : vector<8x256xf32>
    %102 = arith.addf %98, %101 : vector<8x256xf32>
    %c22 = arith.constant 22 : index
    %c0_58 = arith.constant 0 : index
    %c0_59 = arith.constant 0 : index
    %103 = vector.load %arg1[%c22, %c0_58, %c0_59] : memref<126x8x256xf32, #tpu.memory_space<vmem>>, vector<1x8x256xf32>
    %104 = vector.shape_cast %103 : vector<1x8x256xf32> to vector<8x256xf32>
    %105 = arith.mulf %104, %0 : vector<8x256xf32>
    %106 = arith.addf %102, %105 : vector<8x256xf32>
    %c23 = arith.constant 23 : index
    %c0_60 = arith.constant 0 : index
    %c0_61 = arith.constant 0 : index
    %107 = vector.load %arg1[%c23, %c0_60, %c0_61] : memref<126x8x256xf32, #tpu.memory_space<vmem>>, vector<1x8x256xf32>
    %108 = vector.shape_cast %107 : vector<1x8x256xf32> to vector<8x256xf32>
    %109 = arith.mulf %108, %11 : vector<8x256xf32>
    %110 = arith.addf %106, %109 : vector<8x256xf32>
    %c24 = arith.constant 24 : index
    %c0_62 = arith.constant 0 : index
    %c0_63 = arith.constant 0 : index
    %111 = vector.load %arg1[%c24, %c0_62, %c0_63] : memref<126x8x256xf32, #tpu.memory_space<vmem>>, vector<1x8x256xf32>
    %112 = vector.shape_cast %111 : vector<1x8x256xf32> to vector<8x256xf32>
    %113 = arith.mulf %112, %12 : vector<8x256xf32>
    %114 = arith.addf %110, %113 : vector<8x256xf32>
    %c25 = arith.constant 25 : index
    %c0_64 = arith.constant 0 : index
    %c0_65 = arith.constant 0 : index
    %115 = vector.load %arg1[%c25, %c0_64, %c0_65] : memref<126x8x256xf32, #tpu.memory_space<vmem>>, vector<1x8x256xf32>
    %116 = vector.shape_cast %115 : vector<1x8x256xf32> to vector<8x256xf32>
    %117 = arith.mulf %116, %13 : vector<8x256xf32>
    %118 = arith.addf %114, %117 : vector<8x256xf32>
    %c26 = arith.constant 26 : index
    %c0_66 = arith.constant 0 : index
    %c0_67 = arith.constant 0 : index
    %119 = vector.load %arg1[%c26, %c0_66, %c0_67] : memref<126x8x256xf32, #tpu.memory_space<vmem>>, vector<1x8x256xf32>
    %120 = vector.shape_cast %119 : vector<1x8x256xf32> to vector<8x256xf32>
    %121 = arith.mulf %120, %14 : vector<8x256xf32>
    %122 = arith.addf %118, %121 : vector<8x256xf32>
    %c1_i32_68 = arith.constant 1 : i32
    %123 = tpu.dynamic_rotate %122 by %c1_i32_68 dim 0 : vector<8x256xf32>, i32 -> vector<8x256xf32>
    %124 = arith.addf %87, %123 : vector<8x256xf32>
    %c27 = arith.constant 27 : index
    %c0_69 = arith.constant 0 : index
    %c0_70 = arith.constant 0 : index
    %125 = vector.load %arg1[%c27, %c0_69, %c0_70] : memref<126x8x256xf32, #tpu.memory_space<vmem>>, vector<1x8x256xf32>
    %126 = vector.shape_cast %125 : vector<1x8x256xf32> to vector<8x256xf32>
    %127 = arith.mulf %126, %7 : vector<8x256xf32>
    %c28 = arith.constant 28 : index
    %c0_71 = arith.constant 0 : index
    %c0_72 = arith.constant 0 : index
    %128 = vector.load %arg1[%c28, %c0_71, %c0_72] : memref<126x8x256xf32, #tpu.memory_space<vmem>>, vector<1x8x256xf32>
    %129 = vector.shape_cast %128 : vector<1x8x256xf32> to vector<8x256xf32>
    %130 = arith.mulf %129, %8 : vector<8x256xf32>
    %131 = arith.addf %127, %130 : vector<8x256xf32>
    %c29 = arith.constant 29 : index
    %c0_73 = arith.constant 0 : index
    %c0_74 = arith.constant 0 : index
    %132 = vector.load %arg1[%c29, %c0_73, %c0_74] : memref<126x8x256xf32, #tpu.memory_space<vmem>>, vector<1x8x256xf32>
    %133 = vector.shape_cast %132 : vector<1x8x256xf32> to vector<8x256xf32>
    %134 = arith.mulf %133, %9 : vector<8x256xf32>
    %135 = arith.addf %131, %134 : vector<8x256xf32>
    %c30 = arith.constant 30 : index
    %c0_75 = arith.constant 0 : index
    %c0_76 = arith.constant 0 : index
    %136 = vector.load %arg1[%c30, %c0_75, %c0_76] : memref<126x8x256xf32, #tpu.memory_space<vmem>>, vector<1x8x256xf32>
    %137 = vector.shape_cast %136 : vector<1x8x256xf32> to vector<8x256xf32>
    %138 = arith.mulf %137, %10 : vector<8x256xf32>
    %139 = arith.addf %135, %138 : vector<8x256xf32>
    %c31 = arith.constant 31 : index
    %c0_77 = arith.constant 0 : index
    %c0_78 = arith.constant 0 : index
    %140 = vector.load %arg1[%c31, %c0_77, %c0_78] : memref<126x8x256xf32, #tpu.memory_space<vmem>>, vector<1x8x256xf32>
    %141 = vector.shape_cast %140 : vector<1x8x256xf32> to vector<8x256xf32>
    %142 = arith.mulf %141, %0 : vector<8x256xf32>
    %143 = arith.addf %139, %142 : vector<8x256xf32>
    %c32 = arith.constant 32 : index
    %c0_79 = arith.constant 0 : index
    %c0_80 = arith.constant 0 : index
    %144 = vector.load %arg1[%c32, %c0_79, %c0_80] : memref<126x8x256xf32, #tpu.memory_space<vmem>>, vector<1x8x256xf32>
    %145 = vector.shape_cast %144 : vector<1x8x256xf32> to vector<8x256xf32>
    %146 = arith.mulf %145, %11 : vector<8x256xf32>
    %147 = arith.addf %143, %146 : vector<8x256xf32>
    %c33 = arith.constant 33 : index
    %c0_81 = arith.constant 0 : index
    %c0_82 = arith.constant 0 : index
    %148 = vector.load %arg1[%c33, %c0_81, %c0_82] : memref<126x8x256xf32, #tpu.memory_space<vmem>>, vector<1x8x256xf32>
    %149 = vector.shape_cast %148 : vector<1x8x256xf32> to vector<8x256xf32>
    %150 = arith.mulf %149, %12 : vector<8x256xf32>
    %151 = arith.addf %147, %150 : vector<8x256xf32>
    %c34 = arith.constant 34 : index
    %c0_83 = arith.constant 0 : index
    %c0_84 = arith.constant 0 : index
    %152 = vector.load %arg1[%c34, %c0_83, %c0_84] : memref<126x8x256xf32, #tpu.memory_space<vmem>>, vector<1x8x256xf32>
    %153 = vector.shape_cast %152 : vector<1x8x256xf32> to vector<8x256xf32>
    %154 = arith.mulf %153, %13 : vector<8x256xf32>
    %155 = arith.addf %151, %154 : vector<8x256xf32>
    %c35 = arith.constant 35 : index
    %c0_85 = arith.constant 0 : index
    %c0_86 = arith.constant 0 : index
    %156 = vector.load %arg1[%c35, %c0_85, %c0_86] : memref<126x8x256xf32, #tpu.memory_space<vmem>>, vector<1x8x256xf32>
    %157 = vector.shape_cast %156 : vector<1x8x256xf32> to vector<8x256xf32>
    %158 = arith.mulf %157, %14 : vector<8x256xf32>
    %159 = arith.addf %155, %158 : vector<8x256xf32>
    %160 = arith.addf %124, %159 : vector<8x256xf32>
    %c36 = arith.constant 36 : index
    %c0_87 = arith.constant 0 : index
    %c0_88 = arith.constant 0 : index
    %161 = vector.load %arg1[%c36, %c0_87, %c0_88] : memref<126x8x256xf32, #tpu.memory_space<vmem>>, vector<1x8x256xf32>
    %162 = vector.shape_cast %161 : vector<1x8x256xf32> to vector<8x256xf32>
    %163 = arith.mulf %162, %7 : vector<8x256xf32>
    %c37 = arith.constant 37 : index
    %c0_89 = arith.constant 0 : index
    %c0_90 = arith.constant 0 : index
    %164 = vector.load %arg1[%c37, %c0_89, %c0_90] : memref<126x8x256xf32, #tpu.memory_space<vmem>>, vector<1x8x256xf32>
    %165 = vector.shape_cast %164 : vector<1x8x256xf32> to vector<8x256xf32>
    %166 = arith.mulf %165, %8 : vector<8x256xf32>
    %167 = arith.addf %163, %166 : vector<8x256xf32>
    %c38 = arith.constant 38 : index
    %c0_91 = arith.constant 0 : index
    %c0_92 = arith.constant 0 : index
    %168 = vector.load %arg1[%c38, %c0_91, %c0_92] : memref<126x8x256xf32, #tpu.memory_space<vmem>>, vector<1x8x256xf32>
    %169 = vector.shape_cast %168 : vector<1x8x256xf32> to vector<8x256xf32>
    %170 = arith.mulf %169, %9 : vector<8x256xf32>
    %171 = arith.addf %167, %170 : vector<8x256xf32>
    %c39 = arith.constant 39 : index
    %c0_93 = arith.constant 0 : index
    %c0_94 = arith.constant 0 : index
    %172 = vector.load %arg1[%c39, %c0_93, %c0_94] : memref<126x8x256xf32, #tpu.memory_space<vmem>>, vector<1x8x256xf32>
    %173 = vector.shape_cast %172 : vector<1x8x256xf32> to vector<8x256xf32>
    %174 = arith.mulf %173, %10 : vector<8x256xf32>
    %175 = arith.addf %171, %174 : vector<8x256xf32>
    %c40 = arith.constant 40 : index
    %c0_95 = arith.constant 0 : index
    %c0_96 = arith.constant 0 : index
    %176 = vector.load %arg1[%c40, %c0_95, %c0_96] : memref<126x8x256xf32, #tpu.memory_space<vmem>>, vector<1x8x256xf32>
    %177 = vector.shape_cast %176 : vector<1x8x256xf32> to vector<8x256xf32>
    %178 = arith.mulf %177, %0 : vector<8x256xf32>
    %179 = arith.addf %175, %178 : vector<8x256xf32>
    %c41 = arith.constant 41 : index
    %c0_97 = arith.constant 0 : index
    %c0_98 = arith.constant 0 : index
    %180 = vector.load %arg1[%c41, %c0_97, %c0_98] : memref<126x8x256xf32, #tpu.memory_space<vmem>>, vector<1x8x256xf32>
    %181 = vector.shape_cast %180 : vector<1x8x256xf32> to vector<8x256xf32>
    %182 = arith.mulf %181, %11 : vector<8x256xf32>
    %183 = arith.addf %179, %182 : vector<8x256xf32>
    %c42 = arith.constant 42 : index
    %c0_99 = arith.constant 0 : index
    %c0_100 = arith.constant 0 : index
    %184 = vector.load %arg1[%c42, %c0_99, %c0_100] : memref<126x8x256xf32, #tpu.memory_space<vmem>>, vector<1x8x256xf32>
    %185 = vector.shape_cast %184 : vector<1x8x256xf32> to vector<8x256xf32>
    %186 = arith.mulf %185, %12 : vector<8x256xf32>
    %187 = arith.addf %183, %186 : vector<8x256xf32>
    %c43 = arith.constant 43 : index
    %c0_101 = arith.constant 0 : index
    %c0_102 = arith.constant 0 : index
    %188 = vector.load %arg1[%c43, %c0_101, %c0_102] : memref<126x8x256xf32, #tpu.memory_space<vmem>>, vector<1x8x256xf32>
    %189 = vector.shape_cast %188 : vector<1x8x256xf32> to vector<8x256xf32>
    %190 = arith.mulf %189, %13 : vector<8x256xf32>
    %191 = arith.addf %187, %190 : vector<8x256xf32>
    %c44 = arith.constant 44 : index
    %c0_103 = arith.constant 0 : index
    %c0_104 = arith.constant 0 : index
    %192 = vector.load %arg1[%c44, %c0_103, %c0_104] : memref<126x8x256xf32, #tpu.memory_space<vmem>>, vector<1x8x256xf32>
    %193 = vector.shape_cast %192 : vector<1x8x256xf32> to vector<8x256xf32>
    %194 = arith.mulf %193, %14 : vector<8x256xf32>
    %195 = arith.addf %191, %194 : vector<8x256xf32>
    %c7_i32 = arith.constant 7 : i32
    %196 = tpu.dynamic_rotate %195 by %c7_i32 dim 0 : vector<8x256xf32>, i32 -> vector<8x256xf32>
    %197 = arith.addf %160, %196 : vector<8x256xf32>
    %c45 = arith.constant 45 : index
    %c0_105 = arith.constant 0 : index
    %c0_106 = arith.constant 0 : index
    %198 = vector.load %arg1[%c45, %c0_105, %c0_106] : memref<126x8x256xf32, #tpu.memory_space<vmem>>, vector<1x8x256xf32>
    %199 = vector.shape_cast %198 : vector<1x8x256xf32> to vector<8x256xf32>
    %200 = arith.mulf %199, %7 : vector<8x256xf32>
    %c46 = arith.constant 46 : index
    %c0_107 = arith.constant 0 : index
    %c0_108 = arith.constant 0 : index
    %201 = vector.load %arg1[%c46, %c0_107, %c0_108] : memref<126x8x256xf32, #tpu.memory_space<vmem>>, vector<1x8x256xf32>
    %202 = vector.shape_cast %201 : vector<1x8x256xf32> to vector<8x256xf32>
    %203 = arith.mulf %202, %8 : vector<8x256xf32>
    %204 = arith.addf %200, %203 : vector<8x256xf32>
    %c47 = arith.constant 47 : index
    %c0_109 = arith.constant 0 : index
    %c0_110 = arith.constant 0 : index
    %205 = vector.load %arg1[%c47, %c0_109, %c0_110] : memref<126x8x256xf32, #tpu.memory_space<vmem>>, vector<1x8x256xf32>
    %206 = vector.shape_cast %205 : vector<1x8x256xf32> to vector<8x256xf32>
    %207 = arith.mulf %206, %9 : vector<8x256xf32>
    %208 = arith.addf %204, %207 : vector<8x256xf32>
    %c48 = arith.constant 48 : index
    %c0_111 = arith.constant 0 : index
    %c0_112 = arith.constant 0 : index
    %209 = vector.load %arg1[%c48, %c0_111, %c0_112] : memref<126x8x256xf32, #tpu.memory_space<vmem>>, vector<1x8x256xf32>
    %210 = vector.shape_cast %209 : vector<1x8x256xf32> to vector<8x256xf32>
    %211 = arith.mulf %210, %10 : vector<8x256xf32>
    %212 = arith.addf %208, %211 : vector<8x256xf32>
    %c49 = arith.constant 49 : index
    %c0_113 = arith.constant 0 : index
    %c0_114 = arith.constant 0 : index
    %213 = vector.load %arg1[%c49, %c0_113, %c0_114] : memref<126x8x256xf32, #tpu.memory_space<vmem>>, vector<1x8x256xf32>
    %214 = vector.shape_cast %213 : vector<1x8x256xf32> to vector<8x256xf32>
    %215 = arith.mulf %214, %0 : vector<8x256xf32>
    %216 = arith.addf %212, %215 : vector<8x256xf32>
    %c50 = arith.constant 50 : index
    %c0_115 = arith.constant 0 : index
    %c0_116 = arith.constant 0 : index
    %217 = vector.load %arg1[%c50, %c0_115, %c0_116] : memref<126x8x256xf32, #tpu.memory_space<vmem>>, vector<1x8x256xf32>
    %218 = vector.shape_cast %217 : vector<1x8x256xf32> to vector<8x256xf32>
    %219 = arith.mulf %218, %11 : vector<8x256xf32>
    %220 = arith.addf %216, %219 : vector<8x256xf32>
    %c51 = arith.constant 51 : index
    %c0_117 = arith.constant 0 : index
    %c0_118 = arith.constant 0 : index
    %221 = vector.load %arg1[%c51, %c0_117, %c0_118] : memref<126x8x256xf32, #tpu.memory_space<vmem>>, vector<1x8x256xf32>
    %222 = vector.shape_cast %221 : vector<1x8x256xf32> to vector<8x256xf32>
    %223 = arith.mulf %222, %12 : vector<8x256xf32>
    %224 = arith.addf %220, %223 : vector<8x256xf32>
    %c52 = arith.constant 52 : index
    %c0_119 = arith.constant 0 : index
    %c0_120 = arith.constant 0 : index
    %225 = vector.load %arg1[%c52, %c0_119, %c0_120] : memref<126x8x256xf32, #tpu.memory_space<vmem>>, vector<1x8x256xf32>
    %226 = vector.shape_cast %225 : vector<1x8x256xf32> to vector<8x256xf32>
    %227 = arith.mulf %226, %13 : vector<8x256xf32>
    %228 = arith.addf %224, %227 : vector<8x256xf32>
    %c53 = arith.constant 53 : index
    %c0_121 = arith.constant 0 : index
    %c0_122 = arith.constant 0 : index
    %229 = vector.load %arg1[%c53, %c0_121, %c0_122] : memref<126x8x256xf32, #tpu.memory_space<vmem>>, vector<1x8x256xf32>
    %230 = vector.shape_cast %229 : vector<1x8x256xf32> to vector<8x256xf32>
    %231 = arith.mulf %230, %14 : vector<8x256xf32>
    %232 = arith.addf %228, %231 : vector<8x256xf32>
    %c6_i32 = arith.constant 6 : i32
    %233 = tpu.dynamic_rotate %232 by %c6_i32 dim 0 : vector<8x256xf32>, i32 -> vector<8x256xf32>
    %234 = arith.addf %197, %233 : vector<8x256xf32>
    %c54 = arith.constant 54 : index
    %c0_123 = arith.constant 0 : index
    %c0_124 = arith.constant 0 : index
    %235 = vector.load %arg1[%c54, %c0_123, %c0_124] : memref<126x8x256xf32, #tpu.memory_space<vmem>>, vector<1x8x256xf32>
    %236 = vector.shape_cast %235 : vector<1x8x256xf32> to vector<8x256xf32>
    %237 = arith.mulf %236, %7 : vector<8x256xf32>
    %c55 = arith.constant 55 : index
    %c0_125 = arith.constant 0 : index
    %c0_126 = arith.constant 0 : index
    %238 = vector.load %arg1[%c55, %c0_125, %c0_126] : memref<126x8x256xf32, #tpu.memory_space<vmem>>, vector<1x8x256xf32>
    %239 = vector.shape_cast %238 : vector<1x8x256xf32> to vector<8x256xf32>
    %240 = arith.mulf %239, %8 : vector<8x256xf32>
    %241 = arith.addf %237, %240 : vector<8x256xf32>
    %c56 = arith.constant 56 : index
    %c0_127 = arith.constant 0 : index
    %c0_128 = arith.constant 0 : index
    %242 = vector.load %arg1[%c56, %c0_127, %c0_128] : memref<126x8x256xf32, #tpu.memory_space<vmem>>, vector<1x8x256xf32>
    %243 = vector.shape_cast %242 : vector<1x8x256xf32> to vector<8x256xf32>
    %244 = arith.mulf %243, %9 : vector<8x256xf32>
    %245 = arith.addf %241, %244 : vector<8x256xf32>
    %c57 = arith.constant 57 : index
    %c0_129 = arith.constant 0 : index
    %c0_130 = arith.constant 0 : index
    %246 = vector.load %arg1[%c57, %c0_129, %c0_130] : memref<126x8x256xf32, #tpu.memory_space<vmem>>, vector<1x8x256xf32>
    %247 = vector.shape_cast %246 : vector<1x8x256xf32> to vector<8x256xf32>
    %248 = arith.mulf %247, %10 : vector<8x256xf32>
    %249 = arith.addf %245, %248 : vector<8x256xf32>
    %c58 = arith.constant 58 : index
    %c0_131 = arith.constant 0 : index
    %c0_132 = arith.constant 0 : index
    %250 = vector.load %arg1[%c58, %c0_131, %c0_132] : memref<126x8x256xf32, #tpu.memory_space<vmem>>, vector<1x8x256xf32>
    %251 = vector.shape_cast %250 : vector<1x8x256xf32> to vector<8x256xf32>
    %252 = arith.mulf %251, %0 : vector<8x256xf32>
    %253 = arith.addf %249, %252 : vector<8x256xf32>
    %c59 = arith.constant 59 : index
    %c0_133 = arith.constant 0 : index
    %c0_134 = arith.constant 0 : index
    %254 = vector.load %arg1[%c59, %c0_133, %c0_134] : memref<126x8x256xf32, #tpu.memory_space<vmem>>, vector<1x8x256xf32>
    %255 = vector.shape_cast %254 : vector<1x8x256xf32> to vector<8x256xf32>
    %256 = arith.mulf %255, %11 : vector<8x256xf32>
    %257 = arith.addf %253, %256 : vector<8x256xf32>
    %c60 = arith.constant 60 : index
    %c0_135 = arith.constant 0 : index
    %c0_136 = arith.constant 0 : index
    %258 = vector.load %arg1[%c60, %c0_135, %c0_136] : memref<126x8x256xf32, #tpu.memory_space<vmem>>, vector<1x8x256xf32>
    %259 = vector.shape_cast %258 : vector<1x8x256xf32> to vector<8x256xf32>
    %260 = arith.mulf %259, %12 : vector<8x256xf32>
    %261 = arith.addf %257, %260 : vector<8x256xf32>
    %c61 = arith.constant 61 : index
    %c0_137 = arith.constant 0 : index
    %c0_138 = arith.constant 0 : index
    %262 = vector.load %arg1[%c61, %c0_137, %c0_138] : memref<126x8x256xf32, #tpu.memory_space<vmem>>, vector<1x8x256xf32>
    %263 = vector.shape_cast %262 : vector<1x8x256xf32> to vector<8x256xf32>
    %264 = arith.mulf %263, %13 : vector<8x256xf32>
    %265 = arith.addf %261, %264 : vector<8x256xf32>
    %c62 = arith.constant 62 : index
    %c0_139 = arith.constant 0 : index
    %c0_140 = arith.constant 0 : index
    %266 = vector.load %arg1[%c62, %c0_139, %c0_140] : memref<126x8x256xf32, #tpu.memory_space<vmem>>, vector<1x8x256xf32>
    %267 = vector.shape_cast %266 : vector<1x8x256xf32> to vector<8x256xf32>
    %268 = arith.mulf %267, %14 : vector<8x256xf32>
    %269 = arith.addf %265, %268 : vector<8x256xf32>
    %c5_i32 = arith.constant 5 : i32
    %270 = tpu.dynamic_rotate %269 by %c5_i32 dim 0 : vector<8x256xf32>, i32 -> vector<8x256xf32>
    %271 = arith.addf %234, %270 : vector<8x256xf32>
    %272 = vector.broadcast %1 : vector<8x1xf32> to vector<8x256xf32>
    %273 = arith.addf %271, %272 : vector<8x256xf32>
    %cst = arith.constant dense<0.000000e+00> : vector<8xf32>
    %274 = vector.multi_reduction <add>, %273, %cst [1] : vector<8x256xf32> to vector<8xf32>
    %275 = vector.shape_cast %274 : vector<8xf32> to vector<8x1xf32>
    %276 = arith.mulf %273, %273 : vector<8x256xf32>
    %cst_141 = arith.constant dense<0.000000e+00> : vector<8xf32>
    %277 = vector.multi_reduction <add>, %276, %cst_141 [1] : vector<8x256xf32> to vector<8xf32>
    %278 = vector.shape_cast %277 : vector<8xf32> to vector<8x1xf32>
    %c4_i32 = arith.constant 4 : i32
    %279 = tpu.dynamic_rotate %275 by %c4_i32 dim 0 : vector<8x1xf32>, i32 -> vector<8x1xf32>
    %280 = arith.addf %275, %279 : vector<8x1xf32>
    %c4_i32_142 = arith.constant 4 : i32
    %281 = tpu.dynamic_rotate %278 by %c4_i32_142 dim 0 : vector<8x1xf32>, i32 -> vector<8x1xf32>
    %282 = arith.addf %278, %281 : vector<8x1xf32>
    %cst_143 = arith.constant 0.001953125 : f32
    %283 = vector.broadcast %cst_143 : f32 to vector<8x1xf32>
    %284 = arith.mulf %280, %283 : vector<8x1xf32>
    %cst_144 = arith.constant 0.001953125 : f32
    %285 = vector.broadcast %cst_144 : f32 to vector<8x1xf32>
    %286 = arith.mulf %282, %285 : vector<8x1xf32>
    %287 = arith.mulf %284, %284 : vector<8x1xf32>
    %288 = arith.subf %286, %287 : vector<8x1xf32>
    %cst_145 = arith.constant 0.000000e+00 : f32
    %289 = vector.broadcast %cst_145 : f32 to vector<8x1xf32>
    %290 = arith.maximumf %288, %289 : vector<8x1xf32>
    %cst_146 = arith.constant 9.99999974E-6 : f32
    %291 = vector.broadcast %cst_146 : f32 to vector<8x1xf32>
    %292 = arith.addf %290, %291 : vector<8x1xf32>
    %293 = math.rsqrt %292 : vector<8x1xf32>
    %294 = arith.mulf %2, %293 : vector<8x1xf32>
    %295 = vector.broadcast %284 : vector<8x1xf32> to vector<8x256xf32>
    %296 = arith.subf %273, %295 : vector<8x256xf32>
    %297 = vector.broadcast %294 : vector<8x1xf32> to vector<8x256xf32>
    %298 = arith.mulf %296, %297 : vector<8x256xf32>
    %299 = vector.broadcast %3 : vector<8x1xf32> to vector<8x256xf32>
    %300 = arith.addf %298, %299 : vector<8x256xf32>
    %cst_147 = arith.constant 0.000000e+00 : f32
    %301 = vector.broadcast %cst_147 : f32 to vector<8x256xf32>
    %302 = arith.maximumf %300, %301 : vector<8x256xf32>
    %c17_i32_148 = arith.constant 17 : i32
    %303 = tpu.dynamic_rotate %302 by %c17_i32_148 dim 1 : vector<8x256xf32>, i32 -> vector<8x256xf32>
    %c16_i32_149 = arith.constant 16 : i32
    %304 = tpu.dynamic_rotate %302 by %c16_i32_149 dim 1 : vector<8x256xf32>, i32 -> vector<8x256xf32>
    %c15_i32_150 = arith.constant 15 : i32
    %305 = tpu.dynamic_rotate %302 by %c15_i32_150 dim 1 : vector<8x256xf32>, i32 -> vector<8x256xf32>
    %c1_i32_151 = arith.constant 1 : i32
    %306 = tpu.dynamic_rotate %302 by %c1_i32_151 dim 1 : vector<8x256xf32>, i32 -> vector<8x256xf32>
    %c255_i32_152 = arith.constant 255 : i32
    %307 = tpu.dynamic_rotate %302 by %c255_i32_152 dim 1 : vector<8x256xf32>, i32 -> vector<8x256xf32>
    %c241_i32_153 = arith.constant 241 : i32
    %308 = tpu.dynamic_rotate %302 by %c241_i32_153 dim 1 : vector<8x256xf32>, i32 -> vector<8x256xf32>
    %c240_i32_154 = arith.constant 240 : i32
    %309 = tpu.dynamic_rotate %302 by %c240_i32_154 dim 1 : vector<8x256xf32>, i32 -> vector<8x256xf32>
    %c239_i32_155 = arith.constant 239 : i32
    %310 = tpu.dynamic_rotate %302 by %c239_i32_155 dim 1 : vector<8x256xf32>, i32 -> vector<8x256xf32>
    %c63 = arith.constant 63 : index
    %c0_156 = arith.constant 0 : index
    %c0_157 = arith.constant 0 : index
    %311 = vector.load %arg1[%c63, %c0_156, %c0_157] : memref<126x8x256xf32, #tpu.memory_space<vmem>>, vector<1x8x256xf32>
    %312 = vector.shape_cast %311 : vector<1x8x256xf32> to vector<8x256xf32>
    %313 = arith.mulf %312, %303 : vector<8x256xf32>
    %c64 = arith.constant 64 : index
    %c0_158 = arith.constant 0 : index
    %c0_159 = arith.constant 0 : index
    %314 = vector.load %arg1[%c64, %c0_158, %c0_159] : memref<126x8x256xf32, #tpu.memory_space<vmem>>, vector<1x8x256xf32>
    %315 = vector.shape_cast %314 : vector<1x8x256xf32> to vector<8x256xf32>
    %316 = arith.mulf %315, %304 : vector<8x256xf32>
    %317 = arith.addf %313, %316 : vector<8x256xf32>
    %c65 = arith.constant 65 : index
    %c0_160 = arith.constant 0 : index
    %c0_161 = arith.constant 0 : index
    %318 = vector.load %arg1[%c65, %c0_160, %c0_161] : memref<126x8x256xf32, #tpu.memory_space<vmem>>, vector<1x8x256xf32>
    %319 = vector.shape_cast %318 : vector<1x8x256xf32> to vector<8x256xf32>
    %320 = arith.mulf %319, %305 : vector<8x256xf32>
    %321 = arith.addf %317, %320 : vector<8x256xf32>
    %c66 = arith.constant 66 : index
    %c0_162 = arith.constant 0 : index
    %c0_163 = arith.constant 0 : index
    %322 = vector.load %arg1[%c66, %c0_162, %c0_163] : memref<126x8x256xf32, #tpu.memory_space<vmem>>, vector<1x8x256xf32>
    %323 = vector.shape_cast %322 : vector<1x8x256xf32> to vector<8x256xf32>
    %324 = arith.mulf %323, %306 : vector<8x256xf32>
    %325 = arith.addf %321, %324 : vector<8x256xf32>
    %c67 = arith.constant 67 : index
    %c0_164 = arith.constant 0 : index
    %c0_165 = arith.constant 0 : index
    %326 = vector.load %arg1[%c67, %c0_164, %c0_165] : memref<126x8x256xf32, #tpu.memory_space<vmem>>, vector<1x8x256xf32>
    %327 = vector.shape_cast %326 : vector<1x8x256xf32> to vector<8x256xf32>
    %328 = arith.mulf %327, %302 : vector<8x256xf32>
    %329 = arith.addf %325, %328 : vector<8x256xf32>
    %c68 = arith.constant 68 : index
    %c0_166 = arith.constant 0 : index
    %c0_167 = arith.constant 0 : index
    %330 = vector.load %arg1[%c68, %c0_166, %c0_167] : memref<126x8x256xf32, #tpu.memory_space<vmem>>, vector<1x8x256xf32>
    %331 = vector.shape_cast %330 : vector<1x8x256xf32> to vector<8x256xf32>
    %332 = arith.mulf %331, %307 : vector<8x256xf32>
    %333 = arith.addf %329, %332 : vector<8x256xf32>
    %c69 = arith.constant 69 : index
    %c0_168 = arith.constant 0 : index
    %c0_169 = arith.constant 0 : index
    %334 = vector.load %arg1[%c69, %c0_168, %c0_169] : memref<126x8x256xf32, #tpu.memory_space<vmem>>, vector<1x8x256xf32>
    %335 = vector.shape_cast %334 : vector<1x8x256xf32> to vector<8x256xf32>
    %336 = arith.mulf %335, %308 : vector<8x256xf32>
    %337 = arith.addf %333, %336 : vector<8x256xf32>
    %c70 = arith.constant 70 : index
    %c0_170 = arith.constant 0 : index
    %c0_171 = arith.constant 0 : index
    %338 = vector.load %arg1[%c70, %c0_170, %c0_171] : memref<126x8x256xf32, #tpu.memory_space<vmem>>, vector<1x8x256xf32>
    %339 = vector.shape_cast %338 : vector<1x8x256xf32> to vector<8x256xf32>
    %340 = arith.mulf %339, %309 : vector<8x256xf32>
    %341 = arith.addf %337, %340 : vector<8x256xf32>
    %c71 = arith.constant 71 : index
    %c0_172 = arith.constant 0 : index
    %c0_173 = arith.constant 0 : index
    %342 = vector.load %arg1[%c71, %c0_172, %c0_173] : memref<126x8x256xf32, #tpu.memory_space<vmem>>, vector<1x8x256xf32>
    %343 = vector.shape_cast %342 : vector<1x8x256xf32> to vector<8x256xf32>
    %344 = arith.mulf %343, %310 : vector<8x256xf32>
    %345 = arith.addf %341, %344 : vector<8x256xf32>
    %c3_i32_174 = arith.constant 3 : i32
    %346 = tpu.dynamic_rotate %345 by %c3_i32_174 dim 0 : vector<8x256xf32>, i32 -> vector<8x256xf32>
    %c72 = arith.constant 72 : index
    %c0_175 = arith.constant 0 : index
    %c0_176 = arith.constant 0 : index
    %347 = vector.load %arg1[%c72, %c0_175, %c0_176] : memref<126x8x256xf32, #tpu.memory_space<vmem>>, vector<1x8x256xf32>
    %348 = vector.shape_cast %347 : vector<1x8x256xf32> to vector<8x256xf32>
    %349 = arith.mulf %348, %303 : vector<8x256xf32>
    %c73 = arith.constant 73 : index
    %c0_177 = arith.constant 0 : index
    %c0_178 = arith.constant 0 : index
    %350 = vector.load %arg1[%c73, %c0_177, %c0_178] : memref<126x8x256xf32, #tpu.memory_space<vmem>>, vector<1x8x256xf32>
    %351 = vector.shape_cast %350 : vector<1x8x256xf32> to vector<8x256xf32>
    %352 = arith.mulf %351, %304 : vector<8x256xf32>
    %353 = arith.addf %349, %352 : vector<8x256xf32>
    %c74 = arith.constant 74 : index
    %c0_179 = arith.constant 0 : index
    %c0_180 = arith.constant 0 : index
    %354 = vector.load %arg1[%c74, %c0_179, %c0_180] : memref<126x8x256xf32, #tpu.memory_space<vmem>>, vector<1x8x256xf32>
    %355 = vector.shape_cast %354 : vector<1x8x256xf32> to vector<8x256xf32>
    %356 = arith.mulf %355, %305 : vector<8x256xf32>
    %357 = arith.addf %353, %356 : vector<8x256xf32>
    %c75 = arith.constant 75 : index
    %c0_181 = arith.constant 0 : index
    %c0_182 = arith.constant 0 : index
    %358 = vector.load %arg1[%c75, %c0_181, %c0_182] : memref<126x8x256xf32, #tpu.memory_space<vmem>>, vector<1x8x256xf32>
    %359 = vector.shape_cast %358 : vector<1x8x256xf32> to vector<8x256xf32>
    %360 = arith.mulf %359, %306 : vector<8x256xf32>
    %361 = arith.addf %357, %360 : vector<8x256xf32>
    %c76 = arith.constant 76 : index
    %c0_183 = arith.constant 0 : index
    %c0_184 = arith.constant 0 : index
    %362 = vector.load %arg1[%c76, %c0_183, %c0_184] : memref<126x8x256xf32, #tpu.memory_space<vmem>>, vector<1x8x256xf32>
    %363 = vector.shape_cast %362 : vector<1x8x256xf32> to vector<8x256xf32>
    %364 = arith.mulf %363, %302 : vector<8x256xf32>
    %365 = arith.addf %361, %364 : vector<8x256xf32>
    %c77 = arith.constant 77 : index
    %c0_185 = arith.constant 0 : index
    %c0_186 = arith.constant 0 : index
    %366 = vector.load %arg1[%c77, %c0_185, %c0_186] : memref<126x8x256xf32, #tpu.memory_space<vmem>>, vector<1x8x256xf32>
    %367 = vector.shape_cast %366 : vector<1x8x256xf32> to vector<8x256xf32>
    %368 = arith.mulf %367, %307 : vector<8x256xf32>
    %369 = arith.addf %365, %368 : vector<8x256xf32>
    %c78 = arith.constant 78 : index
    %c0_187 = arith.constant 0 : index
    %c0_188 = arith.constant 0 : index
    %370 = vector.load %arg1[%c78, %c0_187, %c0_188] : memref<126x8x256xf32, #tpu.memory_space<vmem>>, vector<1x8x256xf32>
    %371 = vector.shape_cast %370 : vector<1x8x256xf32> to vector<8x256xf32>
    %372 = arith.mulf %371, %308 : vector<8x256xf32>
    %373 = arith.addf %369, %372 : vector<8x256xf32>
    %c79 = arith.constant 79 : index
    %c0_189 = arith.constant 0 : index
    %c0_190 = arith.constant 0 : index
    %374 = vector.load %arg1[%c79, %c0_189, %c0_190] : memref<126x8x256xf32, #tpu.memory_space<vmem>>, vector<1x8x256xf32>
    %375 = vector.shape_cast %374 : vector<1x8x256xf32> to vector<8x256xf32>
    %376 = arith.mulf %375, %309 : vector<8x256xf32>
    %377 = arith.addf %373, %376 : vector<8x256xf32>
    %c80 = arith.constant 80 : index
    %c0_191 = arith.constant 0 : index
    %c0_192 = arith.constant 0 : index
    %378 = vector.load %arg1[%c80, %c0_191, %c0_192] : memref<126x8x256xf32, #tpu.memory_space<vmem>>, vector<1x8x256xf32>
    %379 = vector.shape_cast %378 : vector<1x8x256xf32> to vector<8x256xf32>
    %380 = arith.mulf %379, %310 : vector<8x256xf32>
    %381 = arith.addf %377, %380 : vector<8x256xf32>
    %c2_i32_193 = arith.constant 2 : i32
    %382 = tpu.dynamic_rotate %381 by %c2_i32_193 dim 0 : vector<8x256xf32>, i32 -> vector<8x256xf32>
    %383 = arith.addf %346, %382 : vector<8x256xf32>
    %c81 = arith.constant 81 : index
    %c0_194 = arith.constant 0 : index
    %c0_195 = arith.constant 0 : index
    %384 = vector.load %arg1[%c81, %c0_194, %c0_195] : memref<126x8x256xf32, #tpu.memory_space<vmem>>, vector<1x8x256xf32>
    %385 = vector.shape_cast %384 : vector<1x8x256xf32> to vector<8x256xf32>
    %386 = arith.mulf %385, %303 : vector<8x256xf32>
    %c82 = arith.constant 82 : index
    %c0_196 = arith.constant 0 : index
    %c0_197 = arith.constant 0 : index
    %387 = vector.load %arg1[%c82, %c0_196, %c0_197] : memref<126x8x256xf32, #tpu.memory_space<vmem>>, vector<1x8x256xf32>
    %388 = vector.shape_cast %387 : vector<1x8x256xf32> to vector<8x256xf32>
    %389 = arith.mulf %388, %304 : vector<8x256xf32>
    %390 = arith.addf %386, %389 : vector<8x256xf32>
    %c83 = arith.constant 83 : index
    %c0_198 = arith.constant 0 : index
    %c0_199 = arith.constant 0 : index
    %391 = vector.load %arg1[%c83, %c0_198, %c0_199] : memref<126x8x256xf32, #tpu.memory_space<vmem>>, vector<1x8x256xf32>
    %392 = vector.shape_cast %391 : vector<1x8x256xf32> to vector<8x256xf32>
    %393 = arith.mulf %392, %305 : vector<8x256xf32>
    %394 = arith.addf %390, %393 : vector<8x256xf32>
    %c84 = arith.constant 84 : index
    %c0_200 = arith.constant 0 : index
    %c0_201 = arith.constant 0 : index
    %395 = vector.load %arg1[%c84, %c0_200, %c0_201] : memref<126x8x256xf32, #tpu.memory_space<vmem>>, vector<1x8x256xf32>
    %396 = vector.shape_cast %395 : vector<1x8x256xf32> to vector<8x256xf32>
    %397 = arith.mulf %396, %306 : vector<8x256xf32>
    %398 = arith.addf %394, %397 : vector<8x256xf32>
    %c85 = arith.constant 85 : index
    %c0_202 = arith.constant 0 : index
    %c0_203 = arith.constant 0 : index
    %399 = vector.load %arg1[%c85, %c0_202, %c0_203] : memref<126x8x256xf32, #tpu.memory_space<vmem>>, vector<1x8x256xf32>
    %400 = vector.shape_cast %399 : vector<1x8x256xf32> to vector<8x256xf32>
    %401 = arith.mulf %400, %302 : vector<8x256xf32>
    %402 = arith.addf %398, %401 : vector<8x256xf32>
    %c86 = arith.constant 86 : index
    %c0_204 = arith.constant 0 : index
    %c0_205 = arith.constant 0 : index
    %403 = vector.load %arg1[%c86, %c0_204, %c0_205] : memref<126x8x256xf32, #tpu.memory_space<vmem>>, vector<1x8x256xf32>
    %404 = vector.shape_cast %403 : vector<1x8x256xf32> to vector<8x256xf32>
    %405 = arith.mulf %404, %307 : vector<8x256xf32>
    %406 = arith.addf %402, %405 : vector<8x256xf32>
    %c87 = arith.constant 87 : index
    %c0_206 = arith.constant 0 : index
    %c0_207 = arith.constant 0 : index
    %407 = vector.load %arg1[%c87, %c0_206, %c0_207] : memref<126x8x256xf32, #tpu.memory_space<vmem>>, vector<1x8x256xf32>
    %408 = vector.shape_cast %407 : vector<1x8x256xf32> to vector<8x256xf32>
    %409 = arith.mulf %408, %308 : vector<8x256xf32>
    %410 = arith.addf %406, %409 : vector<8x256xf32>
    %c88 = arith.constant 88 : index
    %c0_208 = arith.constant 0 : index
    %c0_209 = arith.constant 0 : index
    %411 = vector.load %arg1[%c88, %c0_208, %c0_209] : memref<126x8x256xf32, #tpu.memory_space<vmem>>, vector<1x8x256xf32>
    %412 = vector.shape_cast %411 : vector<1x8x256xf32> to vector<8x256xf32>
    %413 = arith.mulf %412, %309 : vector<8x256xf32>
    %414 = arith.addf %410, %413 : vector<8x256xf32>
    %c89 = arith.constant 89 : index
    %c0_210 = arith.constant 0 : index
    %c0_211 = arith.constant 0 : index
    %415 = vector.load %arg1[%c89, %c0_210, %c0_211] : memref<126x8x256xf32, #tpu.memory_space<vmem>>, vector<1x8x256xf32>
    %416 = vector.shape_cast %415 : vector<1x8x256xf32> to vector<8x256xf32>
    %417 = arith.mulf %416, %310 : vector<8x256xf32>
    %418 = arith.addf %414, %417 : vector<8x256xf32>
    %c1_i32_212 = arith.constant 1 : i32
    %419 = tpu.dynamic_rotate %418 by %c1_i32_212 dim 0 : vector<8x256xf32>, i32 -> vector<8x256xf32>
    %420 = arith.addf %383, %419 : vector<8x256xf32>
    %c90 = arith.constant 90 : index
    %c0_213 = arith.constant 0 : index
    %c0_214 = arith.constant 0 : index
    %421 = vector.load %arg1[%c90, %c0_213, %c0_214] : memref<126x8x256xf32, #tpu.memory_space<vmem>>, vector<1x8x256xf32>
    %422 = vector.shape_cast %421 : vector<1x8x256xf32> to vector<8x256xf32>
    %423 = arith.mulf %422, %303 : vector<8x256xf32>
    %c91 = arith.constant 91 : index
    %c0_215 = arith.constant 0 : index
    %c0_216 = arith.constant 0 : index
    %424 = vector.load %arg1[%c91, %c0_215, %c0_216] : memref<126x8x256xf32, #tpu.memory_space<vmem>>, vector<1x8x256xf32>
    %425 = vector.shape_cast %424 : vector<1x8x256xf32> to vector<8x256xf32>
    %426 = arith.mulf %425, %304 : vector<8x256xf32>
    %427 = arith.addf %423, %426 : vector<8x256xf32>
    %c92 = arith.constant 92 : index
    %c0_217 = arith.constant 0 : index
    %c0_218 = arith.constant 0 : index
    %428 = vector.load %arg1[%c92, %c0_217, %c0_218] : memref<126x8x256xf32, #tpu.memory_space<vmem>>, vector<1x8x256xf32>
    %429 = vector.shape_cast %428 : vector<1x8x256xf32> to vector<8x256xf32>
    %430 = arith.mulf %429, %305 : vector<8x256xf32>
    %431 = arith.addf %427, %430 : vector<8x256xf32>
    %c93 = arith.constant 93 : index
    %c0_219 = arith.constant 0 : index
    %c0_220 = arith.constant 0 : index
    %432 = vector.load %arg1[%c93, %c0_219, %c0_220] : memref<126x8x256xf32, #tpu.memory_space<vmem>>, vector<1x8x256xf32>
    %433 = vector.shape_cast %432 : vector<1x8x256xf32> to vector<8x256xf32>
    %434 = arith.mulf %433, %306 : vector<8x256xf32>
    %435 = arith.addf %431, %434 : vector<8x256xf32>
    %c94 = arith.constant 94 : index
    %c0_221 = arith.constant 0 : index
    %c0_222 = arith.constant 0 : index
    %436 = vector.load %arg1[%c94, %c0_221, %c0_222] : memref<126x8x256xf32, #tpu.memory_space<vmem>>, vector<1x8x256xf32>
    %437 = vector.shape_cast %436 : vector<1x8x256xf32> to vector<8x256xf32>
    %438 = arith.mulf %437, %302 : vector<8x256xf32>
    %439 = arith.addf %435, %438 : vector<8x256xf32>
    %c95 = arith.constant 95 : index
    %c0_223 = arith.constant 0 : index
    %c0_224 = arith.constant 0 : index
    %440 = vector.load %arg1[%c95, %c0_223, %c0_224] : memref<126x8x256xf32, #tpu.memory_space<vmem>>, vector<1x8x256xf32>
    %441 = vector.shape_cast %440 : vector<1x8x256xf32> to vector<8x256xf32>
    %442 = arith.mulf %441, %307 : vector<8x256xf32>
    %443 = arith.addf %439, %442 : vector<8x256xf32>
    %c96 = arith.constant 96 : index
    %c0_225 = arith.constant 0 : index
    %c0_226 = arith.constant 0 : index
    %444 = vector.load %arg1[%c96, %c0_225, %c0_226] : memref<126x8x256xf32, #tpu.memory_space<vmem>>, vector<1x8x256xf32>
    %445 = vector.shape_cast %444 : vector<1x8x256xf32> to vector<8x256xf32>
    %446 = arith.mulf %445, %308 : vector<8x256xf32>
    %447 = arith.addf %443, %446 : vector<8x256xf32>
    %c97 = arith.constant 97 : index
    %c0_227 = arith.constant 0 : index
    %c0_228 = arith.constant 0 : index
    %448 = vector.load %arg1[%c97, %c0_227, %c0_228] : memref<126x8x256xf32, #tpu.memory_space<vmem>>, vector<1x8x256xf32>
    %449 = vector.shape_cast %448 : vector<1x8x256xf32> to vector<8x256xf32>
    %450 = arith.mulf %449, %309 : vector<8x256xf32>
    %451 = arith.addf %447, %450 : vector<8x256xf32>
    %c98 = arith.constant 98 : index
    %c0_229 = arith.constant 0 : index
    %c0_230 = arith.constant 0 : index
    %452 = vector.load %arg1[%c98, %c0_229, %c0_230] : memref<126x8x256xf32, #tpu.memory_space<vmem>>, vector<1x8x256xf32>
    %453 = vector.shape_cast %452 : vector<1x8x256xf32> to vector<8x256xf32>
    %454 = arith.mulf %453, %310 : vector<8x256xf32>
    %455 = arith.addf %451, %454 : vector<8x256xf32>
    %456 = arith.addf %420, %455 : vector<8x256xf32>
    %c99 = arith.constant 99 : index
    %c0_231 = arith.constant 0 : index
    %c0_232 = arith.constant 0 : index
    %457 = vector.load %arg1[%c99, %c0_231, %c0_232] : memref<126x8x256xf32, #tpu.memory_space<vmem>>, vector<1x8x256xf32>
    %458 = vector.shape_cast %457 : vector<1x8x256xf32> to vector<8x256xf32>
    %459 = arith.mulf %458, %303 : vector<8x256xf32>
    %c100 = arith.constant 100 : index
    %c0_233 = arith.constant 0 : index
    %c0_234 = arith.constant 0 : index
    %460 = vector.load %arg1[%c100, %c0_233, %c0_234] : memref<126x8x256xf32, #tpu.memory_space<vmem>>, vector<1x8x256xf32>
    %461 = vector.shape_cast %460 : vector<1x8x256xf32> to vector<8x256xf32>
    %462 = arith.mulf %461, %304 : vector<8x256xf32>
    %463 = arith.addf %459, %462 : vector<8x256xf32>
    %c101 = arith.constant 101 : index
    %c0_235 = arith.constant 0 : index
    %c0_236 = arith.constant 0 : index
    %464 = vector.load %arg1[%c101, %c0_235, %c0_236] : memref<126x8x256xf32, #tpu.memory_space<vmem>>, vector<1x8x256xf32>
    %465 = vector.shape_cast %464 : vector<1x8x256xf32> to vector<8x256xf32>
    %466 = arith.mulf %465, %305 : vector<8x256xf32>
    %467 = arith.addf %463, %466 : vector<8x256xf32>
    %c102 = arith.constant 102 : index
    %c0_237 = arith.constant 0 : index
    %c0_238 = arith.constant 0 : index
    %468 = vector.load %arg1[%c102, %c0_237, %c0_238] : memref<126x8x256xf32, #tpu.memory_space<vmem>>, vector<1x8x256xf32>
    %469 = vector.shape_cast %468 : vector<1x8x256xf32> to vector<8x256xf32>
    %470 = arith.mulf %469, %306 : vector<8x256xf32>
    %471 = arith.addf %467, %470 : vector<8x256xf32>
    %c103 = arith.constant 103 : index
    %c0_239 = arith.constant 0 : index
    %c0_240 = arith.constant 0 : index
    %472 = vector.load %arg1[%c103, %c0_239, %c0_240] : memref<126x8x256xf32, #tpu.memory_space<vmem>>, vector<1x8x256xf32>
    %473 = vector.shape_cast %472 : vector<1x8x256xf32> to vector<8x256xf32>
    %474 = arith.mulf %473, %302 : vector<8x256xf32>
    %475 = arith.addf %471, %474 : vector<8x256xf32>
    %c104 = arith.constant 104 : index
    %c0_241 = arith.constant 0 : index
    %c0_242 = arith.constant 0 : index
    %476 = vector.load %arg1[%c104, %c0_241, %c0_242] : memref<126x8x256xf32, #tpu.memory_space<vmem>>, vector<1x8x256xf32>
    %477 = vector.shape_cast %476 : vector<1x8x256xf32> to vector<8x256xf32>
    %478 = arith.mulf %477, %307 : vector<8x256xf32>
    %479 = arith.addf %475, %478 : vector<8x256xf32>
    %c105 = arith.constant 105 : index
    %c0_243 = arith.constant 0 : index
    %c0_244 = arith.constant 0 : index
    %480 = vector.load %arg1[%c105, %c0_243, %c0_244] : memref<126x8x256xf32, #tpu.memory_space<vmem>>, vector<1x8x256xf32>
    %481 = vector.shape_cast %480 : vector<1x8x256xf32> to vector<8x256xf32>
    %482 = arith.mulf %481, %308 : vector<8x256xf32>
    %483 = arith.addf %479, %482 : vector<8x256xf32>
    %c106 = arith.constant 106 : index
    %c0_245 = arith.constant 0 : index
    %c0_246 = arith.constant 0 : index
    %484 = vector.load %arg1[%c106, %c0_245, %c0_246] : memref<126x8x256xf32, #tpu.memory_space<vmem>>, vector<1x8x256xf32>
    %485 = vector.shape_cast %484 : vector<1x8x256xf32> to vector<8x256xf32>
    %486 = arith.mulf %485, %309 : vector<8x256xf32>
    %487 = arith.addf %483, %486 : vector<8x256xf32>
    %c107 = arith.constant 107 : index
    %c0_247 = arith.constant 0 : index
    %c0_248 = arith.constant 0 : index
    %488 = vector.load %arg1[%c107, %c0_247, %c0_248] : memref<126x8x256xf32, #tpu.memory_space<vmem>>, vector<1x8x256xf32>
    %489 = vector.shape_cast %488 : vector<1x8x256xf32> to vector<8x256xf32>
    %490 = arith.mulf %489, %310 : vector<8x256xf32>
    %491 = arith.addf %487, %490 : vector<8x256xf32>
    %c7_i32_249 = arith.constant 7 : i32
    %492 = tpu.dynamic_rotate %491 by %c7_i32_249 dim 0 : vector<8x256xf32>, i32 -> vector<8x256xf32>
    %493 = arith.addf %456, %492 : vector<8x256xf32>
    %c108 = arith.constant 108 : index
    %c0_250 = arith.constant 0 : index
    %c0_251 = arith.constant 0 : index
    %494 = vector.load %arg1[%c108, %c0_250, %c0_251] : memref<126x8x256xf32, #tpu.memory_space<vmem>>, vector<1x8x256xf32>
    %495 = vector.shape_cast %494 : vector<1x8x256xf32> to vector<8x256xf32>
    %496 = arith.mulf %495, %303 : vector<8x256xf32>
    %c109 = arith.constant 109 : index
    %c0_252 = arith.constant 0 : index
    %c0_253 = arith.constant 0 : index
    %497 = vector.load %arg1[%c109, %c0_252, %c0_253] : memref<126x8x256xf32, #tpu.memory_space<vmem>>, vector<1x8x256xf32>
    %498 = vector.shape_cast %497 : vector<1x8x256xf32> to vector<8x256xf32>
    %499 = arith.mulf %498, %304 : vector<8x256xf32>
    %500 = arith.addf %496, %499 : vector<8x256xf32>
    %c110 = arith.constant 110 : index
    %c0_254 = arith.constant 0 : index
    %c0_255 = arith.constant 0 : index
    %501 = vector.load %arg1[%c110, %c0_254, %c0_255] : memref<126x8x256xf32, #tpu.memory_space<vmem>>, vector<1x8x256xf32>
    %502 = vector.shape_cast %501 : vector<1x8x256xf32> to vector<8x256xf32>
    %503 = arith.mulf %502, %305 : vector<8x256xf32>
    %504 = arith.addf %500, %503 : vector<8x256xf32>
    %c111 = arith.constant 111 : index
    %c0_256 = arith.constant 0 : index
    %c0_257 = arith.constant 0 : index
    %505 = vector.load %arg1[%c111, %c0_256, %c0_257] : memref<126x8x256xf32, #tpu.memory_space<vmem>>, vector<1x8x256xf32>
    %506 = vector.shape_cast %505 : vector<1x8x256xf32> to vector<8x256xf32>
    %507 = arith.mulf %506, %306 : vector<8x256xf32>
    %508 = arith.addf %504, %507 : vector<8x256xf32>
    %c112 = arith.constant 112 : index
    %c0_258 = arith.constant 0 : index
    %c0_259 = arith.constant 0 : index
    %509 = vector.load %arg1[%c112, %c0_258, %c0_259] : memref<126x8x256xf32, #tpu.memory_space<vmem>>, vector<1x8x256xf32>
    %510 = vector.shape_cast %509 : vector<1x8x256xf32> to vector<8x256xf32>
    %511 = arith.mulf %510, %302 : vector<8x256xf32>
    %512 = arith.addf %508, %511 : vector<8x256xf32>
    %c113 = arith.constant 113 : index
    %c0_260 = arith.constant 0 : index
    %c0_261 = arith.constant 0 : index
    %513 = vector.load %arg1[%c113, %c0_260, %c0_261] : memref<126x8x256xf32, #tpu.memory_space<vmem>>, vector<1x8x256xf32>
    %514 = vector.shape_cast %513 : vector<1x8x256xf32> to vector<8x256xf32>
    %515 = arith.mulf %514, %307 : vector<8x256xf32>
    %516 = arith.addf %512, %515 : vector<8x256xf32>
    %c114 = arith.constant 114 : index
    %c0_262 = arith.constant 0 : index
    %c0_263 = arith.constant 0 : index
    %517 = vector.load %arg1[%c114, %c0_262, %c0_263] : memref<126x8x256xf32, #tpu.memory_space<vmem>>, vector<1x8x256xf32>
    %518 = vector.shape_cast %517 : vector<1x8x256xf32> to vector<8x256xf32>
    %519 = arith.mulf %518, %308 : vector<8x256xf32>
    %520 = arith.addf %516, %519 : vector<8x256xf32>
    %c115 = arith.constant 115 : index
    %c0_264 = arith.constant 0 : index
    %c0_265 = arith.constant 0 : index
    %521 = vector.load %arg1[%c115, %c0_264, %c0_265] : memref<126x8x256xf32, #tpu.memory_space<vmem>>, vector<1x8x256xf32>
    %522 = vector.shape_cast %521 : vector<1x8x256xf32> to vector<8x256xf32>
    %523 = arith.mulf %522, %309 : vector<8x256xf32>
    %524 = arith.addf %520, %523 : vector<8x256xf32>
    %c116 = arith.constant 116 : index
    %c0_266 = arith.constant 0 : index
    %c0_267 = arith.constant 0 : index
    %525 = vector.load %arg1[%c116, %c0_266, %c0_267] : memref<126x8x256xf32, #tpu.memory_space<vmem>>, vector<1x8x256xf32>
    %526 = vector.shape_cast %525 : vector<1x8x256xf32> to vector<8x256xf32>
    %527 = arith.mulf %526, %310 : vector<8x256xf32>
    %528 = arith.addf %524, %527 : vector<8x256xf32>
    %c6_i32_268 = arith.constant 6 : i32
    %529 = tpu.dynamic_rotate %528 by %c6_i32_268 dim 0 : vector<8x256xf32>, i32 -> vector<8x256xf32>
    %530 = arith.addf %493, %529 : vector<8x256xf32>
    %c117 = arith.constant 117 : index
    %c0_269 = arith.constant 0 : index
    %c0_270 = arith.constant 0 : index
    %531 = vector.load %arg1[%c117, %c0_269, %c0_270] : memref<126x8x256xf32, #tpu.memory_space<vmem>>, vector<1x8x256xf32>
    %532 = vector.shape_cast %531 : vector<1x8x256xf32> to vector<8x256xf32>
    %533 = arith.mulf %532, %303 : vector<8x256xf32>
    %c118 = arith.constant 118 : index
    %c0_271 = arith.constant 0 : index
    %c0_272 = arith.constant 0 : index
    %534 = vector.load %arg1[%c118, %c0_271, %c0_272] : memref<126x8x256xf32, #tpu.memory_space<vmem>>, vector<1x8x256xf32>
    %535 = vector.shape_cast %534 : vector<1x8x256xf32> to vector<8x256xf32>
    %536 = arith.mulf %535, %304 : vector<8x256xf32>
    %537 = arith.addf %533, %536 : vector<8x256xf32>
    %c119 = arith.constant 119 : index
    %c0_273 = arith.constant 0 : index
    %c0_274 = arith.constant 0 : index
    %538 = vector.load %arg1[%c119, %c0_273, %c0_274] : memref<126x8x256xf32, #tpu.memory_space<vmem>>, vector<1x8x256xf32>
    %539 = vector.shape_cast %538 : vector<1x8x256xf32> to vector<8x256xf32>
    %540 = arith.mulf %539, %305 : vector<8x256xf32>
    %541 = arith.addf %537, %540 : vector<8x256xf32>
    %c120 = arith.constant 120 : index
    %c0_275 = arith.constant 0 : index
    %c0_276 = arith.constant 0 : index
    %542 = vector.load %arg1[%c120, %c0_275, %c0_276] : memref<126x8x256xf32, #tpu.memory_space<vmem>>, vector<1x8x256xf32>
    %543 = vector.shape_cast %542 : vector<1x8x256xf32> to vector<8x256xf32>
    %544 = arith.mulf %543, %306 : vector<8x256xf32>
    %545 = arith.addf %541, %544 : vector<8x256xf32>
    %c121 = arith.constant 121 : index
    %c0_277 = arith.constant 0 : index
    %c0_278 = arith.constant 0 : index
    %546 = vector.load %arg1[%c121, %c0_277, %c0_278] : memref<126x8x256xf32, #tpu.memory_space<vmem>>, vector<1x8x256xf32>
    %547 = vector.shape_cast %546 : vector<1x8x256xf32> to vector<8x256xf32>
    %548 = arith.mulf %547, %302 : vector<8x256xf32>
    %549 = arith.addf %545, %548 : vector<8x256xf32>
    %c122 = arith.constant 122 : index
    %c0_279 = arith.constant 0 : index
    %c0_280 = arith.constant 0 : index
    %550 = vector.load %arg1[%c122, %c0_279, %c0_280] : memref<126x8x256xf32, #tpu.memory_space<vmem>>, vector<1x8x256xf32>
    %551 = vector.shape_cast %550 : vector<1x8x256xf32> to vector<8x256xf32>
    %552 = arith.mulf %551, %307 : vector<8x256xf32>
    %553 = arith.addf %549, %552 : vector<8x256xf32>
    %c123 = arith.constant 123 : index
    %c0_281 = arith.constant 0 : index
    %c0_282 = arith.constant 0 : index
    %554 = vector.load %arg1[%c123, %c0_281, %c0_282] : memref<126x8x256xf32, #tpu.memory_space<vmem>>, vector<1x8x256xf32>
    %555 = vector.shape_cast %554 : vector<1x8x256xf32> to vector<8x256xf32>
    %556 = arith.mulf %555, %308 : vector<8x256xf32>
    %557 = arith.addf %553, %556 : vector<8x256xf32>
    %c124 = arith.constant 124 : index
    %c0_283 = arith.constant 0 : index
    %c0_284 = arith.constant 0 : index
    %558 = vector.load %arg1[%c124, %c0_283, %c0_284] : memref<126x8x256xf32, #tpu.memory_space<vmem>>, vector<1x8x256xf32>
    %559 = vector.shape_cast %558 : vector<1x8x256xf32> to vector<8x256xf32>
    %560 = arith.mulf %559, %309 : vector<8x256xf32>
    %561 = arith.addf %557, %560 : vector<8x256xf32>
    %c125 = arith.constant 125 : index
    %c0_285 = arith.constant 0 : index
    %c0_286 = arith.constant 0 : index
    %562 = vector.load %arg1[%c125, %c0_285, %c0_286] : memref<126x8x256xf32, #tpu.memory_space<vmem>>, vector<1x8x256xf32>
    %563 = vector.shape_cast %562 : vector<1x8x256xf32> to vector<8x256xf32>
    %564 = arith.mulf %563, %310 : vector<8x256xf32>
    %565 = arith.addf %561, %564 : vector<8x256xf32>
    %c5_i32_287 = arith.constant 5 : i32
    %566 = tpu.dynamic_rotate %565 by %c5_i32_287 dim 0 : vector<8x256xf32>, i32 -> vector<8x256xf32>
    %567 = arith.addf %530, %566 : vector<8x256xf32>
    %568 = vector.broadcast %4 : vector<8x1xf32> to vector<8x256xf32>
    %569 = arith.addf %567, %568 : vector<8x256xf32>
    %cst_288 = arith.constant dense<0.000000e+00> : vector<8xf32>
    %570 = vector.multi_reduction <add>, %569, %cst_288 [1] : vector<8x256xf32> to vector<8xf32>
    %571 = vector.shape_cast %570 : vector<8xf32> to vector<8x1xf32>
    %572 = arith.mulf %569, %569 : vector<8x256xf32>
    %cst_289 = arith.constant dense<0.000000e+00> : vector<8xf32>
    %573 = vector.multi_reduction <add>, %572, %cst_289 [1] : vector<8x256xf32> to vector<8xf32>
    %574 = vector.shape_cast %573 : vector<8xf32> to vector<8x1xf32>
    %c4_i32_290 = arith.constant 4 : i32
    %575 = tpu.dynamic_rotate %571 by %c4_i32_290 dim 0 : vector<8x1xf32>, i32 -> vector<8x1xf32>
    %576 = arith.addf %571, %575 : vector<8x1xf32>
    %c4_i32_291 = arith.constant 4 : i32
    %577 = tpu.dynamic_rotate %574 by %c4_i32_291 dim 0 : vector<8x1xf32>, i32 -> vector<8x1xf32>
    %578 = arith.addf %574, %577 : vector<8x1xf32>
    %cst_292 = arith.constant 0.001953125 : f32
    %579 = vector.broadcast %cst_292 : f32 to vector<8x1xf32>
    %580 = arith.mulf %576, %579 : vector<8x1xf32>
    %cst_293 = arith.constant 0.001953125 : f32
    %581 = vector.broadcast %cst_293 : f32 to vector<8x1xf32>
    %582 = arith.mulf %578, %581 : vector<8x1xf32>
    %583 = arith.mulf %580, %580 : vector<8x1xf32>
    %584 = arith.subf %582, %583 : vector<8x1xf32>
    %cst_294 = arith.constant 0.000000e+00 : f32
    %585 = vector.broadcast %cst_294 : f32 to vector<8x1xf32>
    %586 = arith.maximumf %584, %585 : vector<8x1xf32>
    %cst_295 = arith.constant 9.99999974E-6 : f32
    %587 = vector.broadcast %cst_295 : f32 to vector<8x1xf32>
    %588 = arith.addf %586, %587 : vector<8x1xf32>
    %589 = math.rsqrt %588 : vector<8x1xf32>
    %590 = arith.mulf %5, %589 : vector<8x1xf32>
    %591 = vector.broadcast %580 : vector<8x1xf32> to vector<8x256xf32>
    %592 = arith.subf %569, %591 : vector<8x256xf32>
    %593 = vector.broadcast %590 : vector<8x1xf32> to vector<8x256xf32>
    %594 = arith.mulf %592, %593 : vector<8x256xf32>
    %595 = vector.broadcast %6 : vector<8x1xf32> to vector<8x256xf32>
    %596 = arith.addf %594, %595 : vector<8x256xf32>
    %cst_296 = arith.constant 0.000000e+00 : f32
    %597 = vector.broadcast %cst_296 : f32 to vector<8x256xf32>
    %598 = arith.maximumf %596, %597 : vector<8x256xf32>
    %599 = arith.addf %0, %598 : vector<8x256xf32>
    %cst_297 = arith.constant 0.000000e+00 : f32
    %600 = vector.broadcast %cst_297 : f32 to vector<8x256xf32>
    %601 = arith.maximumf %599, %600 : vector<8x256xf32>
    %c0_298 = arith.constant 0 : index
    %c0_299 = arith.constant 0 : index
    %602 = vector.load %arg3[%c0_298, %c0_299] : memref<8x256xf32, #tpu.memory_space<vmem>>, vector<8x256xf32>
    tpu.vector_store %arg3[%c0_298, %c0_299], %601 {strides = array<i32>} : memref<8x256xf32, #tpu.memory_space<vmem>>, vector<8x256xf32>,
    return
  }
}

</mosaic_0001>

<llo_original>
// kernel: tpu_custom_call.1
$region0: #{tpu_custom_call.1}
  #allocation0 [shape = 'u32[]', space=smem, size = 0x4, offset = 0x4, fixed_abs, tag = 'smem constant byte address 0x4 - core index']
  #allocation1 [shape = 'u32[144,128]{1,0:T(1,128)}', space=vmem, size = 0x12000, scoped, tag = 'internal scratch']
  %s0 = inlined_call_operand.hbm [shape: f32[8,256], index: 0, kind: input, shape index: {}]
  %s1 = inlined_call_operand.hbm [shape: f32[126,8,256], index: 1, kind: input, shape index: {}]
  %s2 = inlined_call_operand.hbm [shape: f32[8,8], index: 2, kind: input, shape index: {}]
  %s3 = inlined_call_operand.hbm [shape: f32[8,256], index: 3, kind: output, shape index: {}]
  %s4 = sld [smem:[#allocation0]]
  $region34: #{tpu_custom_call.1} parent=0
    _
  %s6 = ssub.s32 1, %s4
  %s7 = scalar_select 0, %s6, %s4
  $region1: #{tpu_custom_call.1} parent=0
    #allocation2 [shape = 'u8[8192]{0}', space=vmem, size = 0x2000, scoped, tag = 'input window, operand 0, single buffered']
    #allocation3 [shape = 's32[1]{0}', space=sflag, size = 0x4, scoped, tag = 'scoped memory for tpu_custom_call.1']
    #allocation4 [shape = 's32[1]{0}', space=sflag, size = 0x4, scoped, tag = 'scoped memory for tpu_custom_call.1']
    #allocation5 [shape = 'u8[1032192]{0}', space=vmem, size = 0xfc000, scoped, tag = 'input window, operand 1, single buffered']
    #allocation6 [shape = 's32[1]{0}', space=sflag, size = 0x4, scoped, tag = 'scoped memory for tpu_custom_call.1']
    #allocation7 [shape = 'u8[4096]{0}', space=vmem, size = 0x1000, scoped, tag = 'input window, operand 2, single buffered']
    #allocation8 [shape = 'u8[8192]{0}', space=vmem, size = 0x2000, scoped, tag = 'output window, operand 0, single buffered']
    %8 = vsyncpa [#allocation3], 0
    %9 = vsyncpa [#allocation6], 0
    %10 = vsyncpa [#allocation4], 0
    // Predicated region
    $region2: #{tpu_custom_call.1} parent=1 // pred_check
      _
    $region3: #{tpu_custom_call.1} parent=1 // pred_check_branch
      %12 = sbr.rel (0) target = $region5
    $region4: #{tpu_custom_call.1} parent=1 // pred_region
      %s14 = ssub.s32 256, 256
      %15 = vsyncadd [#allocation3], %s14
      %s17 = sshll.u32 [#allocation2], 4
      %s18 = int_to_ptr.vmem [resolvable:$true] %s17
      %20 = dma.hbm_to_vmem [thread:$0]  %s0, 256, %s18, [#allocation3]
    $region5: #{tpu_custom_call.1} parent=1 // pred_fallthru
      _
    // Predicated region
    $region6: #{tpu_custom_call.1} parent=1 // pred_check
      _
    $region7: #{tpu_custom_call.1} parent=1 // pred_check_branch
      %22 = sbr.rel (0) target = $region9
    $region8: #{tpu_custom_call.1} parent=1 // pred_region
      %s24 = ssub.s32 32256, 32256
      %25 = vsyncadd [#allocation6], %s24
      %s26 = sshll.u32 [#allocation5], 4
      %s27 = int_to_ptr.vmem [resolvable:$true] %s26
      %32 = dma.hbm_to_vmem [thread:$0]  %s1, 32256, %s27, [#allocation6], 256, 256, 16
    $region9: #{tpu_custom_call.1} parent=1 // pred_fallthru
      _
    // Predicated region
    $region10: #{tpu_custom_call.1} parent=1 // pred_check
      _
    $region11: #{tpu_custom_call.1} parent=1 // pred_check_branch
      %34 = sbr.rel (0) target = $region13
    $region12: #{tpu_custom_call.1} parent=1 // pred_region
      %s36 = ssub.s32 128, 128
      %37 = vsyncadd [#allocation6], %s36
      %s39 = sshll.u32 [#allocation7], 4
      %s40 = int_to_ptr.vmem [resolvable:$true] %s39
      %42 = dma.hbm_to_vmem [thread:$0]  %s2, 128, %s40, [#allocation6]
    $region13: #{tpu_custom_call.1} parent=1 // pred_fallthru
      _
    // Predicated region
    $region14: #{tpu_custom_call.1} parent=1 // pred_check
      _
    $region15: #{tpu_custom_call.1} parent=1 // pred_check_branch
      %44 = sbr.rel (0) target = $region17
    $region16: #{tpu_custom_call.1} parent=1 // pred_region
      %45 = dma.done [#allocation3], 256
    $region17: #{tpu_custom_call.1} parent=1 // pred_fallthru
      _
    // Predicated region
    $region18: #{tpu_custom_call.1} parent=1 // pred_check
      _
    $region19: #{tpu_custom_call.1} parent=1 // pred_check_branch
      %47 = sbr.rel (0) target = $region21
    $region20: #{tpu_custom_call.1} parent=1 // pred_region
      %48 = dma.done [#allocation6], 32256
    $region21: #{tpu_custom_call.1} parent=1 // pred_fallthru
      _
    // Predicated region
    $region22: #{tpu_custom_call.1} parent=1 // pred_check
      _
    $region23: #{tpu_custom_call.1} parent=1 // pred_check_branch
      %50 = sbr.rel (0) target = $region25
    $region24: #{tpu_custom_call.1} parent=1 // pred_region
      %51 = dma.done [#allocation6], 128
    $region25: #{tpu_custom_call.1} parent=1 // pred_fallthru
      _
    %v52 = vld [vmem:[#allocation2] sm:$0xff]
    %v53 = vld [vmem:[#allocation2 + $0x8] sm:$0xff]
    %v54 = vld [vmem:[#allocation7] sm:$0xff]
    %55 = vrot.lane.b32.xlu0 %v52, 17
    %v56 = vpop.permute.xlu0 %55
    %57 = vrot.lane.b32.xlu0 %v53, 17
    %v58 = vpop.permute.xlu0 %57
    %v59 = vlaneseq
    %v60 = vand.u32 %v59, 127
    %vm61 = vcmp.lt.s32.totalorder %v60, 17
    %v62 = vsel %vm61, %v56, %v58
    %v63 = vsel %vm61, %v58, %v56
    %64 = vrot.lane.b32.xlu0 %v52, 16
    %v65 = vpop.permute.xlu0 %64
    %66 = vrot.lane.b32.xlu0 %v53, 16
    %v67 = vpop.permute.xlu0 %66
    %vm68 = vcmp.lt.s32.totalorder %v60, 16
    %v69 = vsel %vm68, %v65, %v67
    %v70 = vsel %vm68, %v67, %v65
    %71 = vrot.lane.b32.xlu0 %v52, 15
    %v72 = vpop.permute.xlu0 %71
    %73 = vrot.lane.b32.xlu0 %v53, 15
    %v74 = vpop.permute.xlu0 %73
    %vm75 = vcmp.lt.s32.totalorder %v60, 15
    %v76 = vsel %vm75, %v72, %v74
    %v77 = vsel %vm75, %v74, %v72
    %78 = vrot.lane.b32.xlu0 %v52, 1
    %v79 = vpop.permute.xlu0 %78
    %80 = vrot.lane.b32.xlu0 %v53, 1
    %v81 = vpop.permute.xlu0 %80
    %vm82 = vcmp.lt.s32.totalorder %v60, 1
    %v83 = vsel %vm82, %v79, %v81
    %v84 = vsel %vm82, %v81, %v79
    %85 = vrot.lane.b32.xlu0 %v52, 127
    %v86 = vpop.permute.xlu0 %85
    %87 = vrot.lane.b32.xlu0 %v53, 127
    %v88 = vpop.permute.xlu0 %87
    %vm89 = vcmp.lt.s32.totalorder %v60, 127
    %v90 = vsel %vm89, %v86, %v88
    %v91 = vsel %vm89, %v88, %v86
    %92 = vrot.lane.b32.xlu0 %v52, 113
    %v93 = vpop.permute.xlu0 %92
    %94 = vrot.lane.b32.xlu0 %v53, 113
    %v95 = vpop.permute.xlu0 %94
    %vm96 = vcmp.lt.s32.totalorder %v60, 113
    %v97 = vsel %vm96, %v93, %v95
    %v98 = vsel %vm96, %v95, %v93
    %99 = vrot.lane.b32.xlu0 %v52, 112
    %v100 = vpop.permute.xlu0 %99
    %101 = vrot.lane.b32.xlu0 %v53, 112
    %v102 = vpop.permute.xlu0 %101
    %vm103 = vcmp.lt.s32.totalorder %v60, 112
    %v104 = vsel %vm103, %v100, %v102
    %v105 = vsel %vm103, %v102, %v100
    %106 = vrot.lane.b32.xlu0 %v52, 111
    %v107 = vpop.permute.xlu0 %106
    %108 = vrot.lane.b32.xlu0 %v53, 111
    %v109 = vpop.permute.xlu0 %108
    %vm110 = vcmp.lt.s32.totalorder %v60, 111
    %v111 = vsel %vm110, %v107, %v109
    %v112 = vsel %vm110, %v109, %v107
    %v113 = vld [vmem:[#allocation5] sm:$0xff]
    %v114 = vld [vmem:[#allocation5 + $0x8] sm:$0xff]
    %v115 = vmul.f32 %v113, %v63
    %v116 = vmul.f32 %v114, %v62
    %s117 = scalar_lea.vmem [#allocation5], 16
    %v118 = vld [vmem:[%s117] sm:$0xff]
    %v119 = vld [vmem:[%s117 + $0x8] sm:$0xff]
    %v120 = vmul.f32 %v118, %v70
    %v121 = vmul.f32 %v119, %v69
    %v122 = vadd.f32 %v115, %v120
    %v123 = vadd.f32 %v116, %v121
    %s124 = scalar_lea.vmem [#allocation5], 32
    %v125 = vld [vmem:[%s124] sm:$0xff]
    %v126 = vld [vmem:[%s124 + $0x8] sm:$0xff]
    %v127 = vmul.f32 %v125, %v77
    %v128 = vmul.f32 %v126, %v76
    %v129 = vadd.f32 %v122, %v127
    %v130 = vadd.f32 %v123, %v128
    %s131 = scalar_lea.vmem [#allocation5], 48
    %v132 = vld [vmem:[%s131] sm:$0xff]
    %v133 = vld [vmem:[%s131 + $0x8] sm:$0xff]
    %v134 = vmul.f32 %v132, %v84
    %v135 = vmul.f32 %v133, %v83
    %v136 = vadd.f32 %v129, %v134
    %v137 = vadd.f32 %v130, %v135
    %s138 = scalar_lea.vmem [#allocation5], 64
    %v139 = vld [vmem:[%s138] sm:$0xff]
    %v140 = vld [vmem:[%s138 + $0x8] sm:$0xff]
    %v141 = vmul.f32 %v139, %v52
    %v142 = vmul.f32 %v140, %v53
    %v143 = vadd.f32 %v136, %v141
    %v144 = vadd.f32 %v137, %v142
    %s145 = scalar_lea.vmem [#allocation5], 80
    %v146 = vld [vmem:[%s145] sm:$0xff]
    %v147 = vld [vmem:[%s145 + $0x8] sm:$0xff]
    %v148 = vmul.f32 %v146, %v90
    %v149 = vmul.f32 %v147, %v91
    %v150 = vadd.f32 %v143, %v148
    %v151 = vadd.f32 %v144, %v149
    %s152 = scalar_lea.vmem [#allocation5], 96
    %v153 = vld [vmem:[%s152] sm:$0xff]
    %v154 = vld [vmem:[%s152 + $0x8] sm:$0xff]
    %v155 = vmul.f32 %v153, %v97
    %v156 = vmul.f32 %v154, %v98
    %v157 = vadd.f32 %v150, %v155
    %v158 = vadd.f32 %v151, %v156
    %s159 = scalar_lea.vmem [#allocation5], 112
    %v160 = vld [vmem:[%s159] sm:$0xff]
    %v161 = vld [vmem:[%s159 + $0x8] sm:$0xff]
    %v162 = vmul.f32 %v160, %v104
    %v163 = vmul.f32 %v161, %v105
    %v164 = vadd.f32 %v157, %v162
    %v165 = vadd.f32 %v158, %v163
    %s166 = scalar_lea.vmem [#allocation5], 128
    %v167 = vld [vmem:[%s166] sm:$0xff]
    %v168 = vld [vmem:[%s166 + $0x8] sm:$0xff]
    %v169 = vmul.f32 %v167, %v111
    %v170 = vmul.f32 %v168, %v112
    %v171 = vadd.f32 %v164, %v169
    %v172 = vadd.f32 %v165, %v170
    %v173 = vrot.slane %v171, 5
    %v174 = vrot.slane %v172, 5
    %s175 = scalar_lea.vmem [#allocation5], 144
    %v176 = vld [vmem:[%s175] sm:$0xff]
    %v177 = vld [vmem:[%s175 + $0x8] sm:$0xff]
    %v178 = vmul.f32 %v176, %v63
    %v179 = vmul.f32 %v177, %v62
    %s180 = scalar_lea.vmem [#allocation5], 160
    %v181 = vld [vmem:[%s180] sm:$0xff]
    %v182 = vld [vmem:[%s180 + $0x8] sm:$0xff]
    %v183 = vmul.f32 %v181, %v70
    %v184 = vmul.f32 %v182, %v69
    %v185 = vadd.f32 %v178, %v183
    %v186 = vadd.f32 %v179, %v184
    %s187 = scalar_lea.vmem [#allocation5], 176
    %v188 = vld [vmem:[%s187] sm:$0xff]
    %v189 = vld [vmem:[%s187 + $0x8] sm:$0xff]
    %v190 = vmul.f32 %v188, %v77
    %v191 = vmul.f32 %v189, %v76
    %v192 = vadd.f32 %v185, %v190
    %v193 = vadd.f32 %v186, %v191
    %s194 = scalar_lea.vmem [#allocation5], 192
    %v195 = vld [vmem:[%s194] sm:$0xff]
    %v196 = vld [vmem:[%s194 + $0x8] sm:$0xff]
    %v197 = vmul.f32 %v195, %v84
    %v198 = vmul.f32 %v196, %v83
    %v199 = vadd.f32 %v192, %v197
    %v200 = vadd.f32 %v193, %v198
    %s201 = scalar_lea.vmem [#allocation5], 208
    %v202 = vld [vmem:[%s201] sm:$0xff]
    %v203 = vld [vmem:[%s201 + $0x8] sm:$0xff]
    %v204 = vmul.f32 %v202, %v52
    %v205 = vmul.f32 %v203, %v53
    %v206 = vadd.f32 %v199, %v204
    %v207 = vadd.f32 %v200, %v205
    %s208 = scalar_lea.vmem [#allocation5], 224
    %v209 = vld [vmem:[%s208] sm:$0xff]
    %v210 = vld [vmem:[%s208 + $0x8] sm:$0xff]
    %v211 = vmul.f32 %v209, %v90
    %v212 = vmul.f32 %v210, %v91
    %v213 = vadd.f32 %v206, %v211
    %v214 = vadd.f32 %v207, %v212
    %s215 = scalar_lea.vmem [#allocation5], 240
    %v216 = vld [vmem:[%s215] sm:$0xff]
    %v217 = vld [vmem:[%s215 + $0x8] sm:$0xff]
    %v218 = vmul.f32 %v216, %v97
    %v219 = vmul.f32 %v217, %v98
    %v220 = vadd.f32 %v213, %v218
    %v221 = vadd.f32 %v214, %v219
    %s222 = scalar_lea.vmem [#allocation5], 256
    %v223 = vld [vmem:[%s222] sm:$0xff]
    %v224 = vld [vmem:[%s222 + $0x8] sm:$0xff]
    %v225 = vmul.f32 %v223, %v104
    %v226 = vmul.f32 %v224, %v105
    %v227 = vadd.f32 %v220, %v225
    %v228 = vadd.f32 %v221, %v226
    %s229 = scalar_lea.vmem [#allocation5], 272
    %v230 = vld [vmem:[%s229] sm:$0xff]
    %v231 = vld [vmem:[%s229 + $0x8] sm:$0xff]
    %v232 = vmul.f32 %v230, %v111
    %v233 = vmul.f32 %v231, %v112
    %v234 = vadd.f32 %v227, %v232
    %v235 = vadd.f32 %v228, %v233
    %v236 = vrot.slane %v234, 6
    %v237 = vrot.slane %v235, 6
    %v238 = vadd.f32 %v173, %v236
    %v239 = vadd.f32 %v174, %v237
    %s240 = scalar_lea.vmem [#allocation5], 288
    %v241 = vld [vmem:[%s240] sm:$0xff]
    %v242 = vld [vmem:[%s240 + $0x8] sm:$0xff]
    %v243 = vmul.f32 %v241, %v63
    %v244 = vmul.f32 %v242, %v62
    %s245 = scalar_lea.vmem [#allocation5], 304
    %v246 = vld [vmem:[%s245] sm:$0xff]
    %v247 = vld [vmem:[%s245 + $0x8] sm:$0xff]
    %v248 = vmul.f32 %v246, %v70
    %v249 = vmul.f32 %v247, %v69
    %v250 = vadd.f32 %v243, %v248
    %v251 = vadd.f32 %v244, %v249
    %s252 = scalar_lea.vmem [#allocation5], 320
    %v253 = vld [vmem:[%s252] sm:$0xff]
    %v254 = vld [vmem:[%s252 + $0x8] sm:$0xff]
    %v255 = vmul.f32 %v253, %v77
    %v256 = vmul.f32 %v254, %v76
    %v257 = vadd.f32 %v250, %v255
    %v258 = vadd.f32 %v251, %v256
    %s259 = scalar_lea.vmem [#allocation5], 336
    %v260 = vld [vmem:[%s259] sm:$0xff]
    %v261 = vld [vmem:[%s259 + $0x8] sm:$0xff]
    %v262 = vmul.f32 %v260, %v84
    %v263 = vmul.f32 %v261, %v83
    %v264 = vadd.f32 %v257, %v262
    %v265 = vadd.f32 %v258, %v263
    %s266 = scalar_lea.vmem [#allocation5], 352
    %v267 = vld [vmem:[%s266] sm:$0xff]
    %v268 = vld [vmem:[%s266 + $0x8] sm:$0xff]
    %v269 = vmul.f32 %v267, %v52
    %v270 = vmul.f32 %v268, %v53
    %v271 = vadd.f32 %v264, %v269
    %v272 = vadd.f32 %v265, %v270
    %s273 = scalar_lea.vmem [#allocation5], 368
    %v274 = vld [vmem:[%s273] sm:$0xff]
    %v275 = vld [vmem:[%s273 + $0x8] sm:$0xff]
    %v276 = vmul.f32 %v274, %v90
    %v277 = vmul.f32 %v275, %v91
    %v278 = vadd.f32 %v271, %v276
    %v279 = vadd.f32 %v272, %v277
    %s280 = scalar_lea.vmem [#allocation5], 384
    %v281 = vld [vmem:[%s280] sm:$0xff]
    %v282 = vld [vmem:[%s280 + $0x8] sm:$0xff]
    %v283 = vmul.f32 %v281, %v97
    %v284 = vmul.f32 %v282, %v98
    %v285 = vadd.f32 %v278, %v283
    %v286 = vadd.f32 %v279, %v284
    %s287 = scalar_lea.vmem [#allocation5], 400
    %v288 = vld [vmem:[%s287] sm:$0xff]
    %v289 = vld [vmem:[%s287 + $0x8] sm:$0xff]
    %v290 = vmul.f32 %v288, %v104
    %v291 = vmul.f32 %v289, %v105
    %v292 = vadd.f32 %v285, %v290
    %v293 = vadd.f32 %v286, %v291
    %s294 = scalar_lea.vmem [#allocation5], 416
    %v295 = vld [vmem:[%s294] sm:$0xff]
    %v296 = vld [vmem:[%s294 + $0x8] sm:$0xff]
    %v297 = vmul.f32 %v295, %v111
    %v298 = vmul.f32 %v296, %v112
    %v299 = vadd.f32 %v292, %v297
    %v300 = vadd.f32 %v293, %v298
    %v301 = vrot.slane %v299, 7
    %v302 = vrot.slane %v300, 7
    %v303 = vadd.f32 %v238, %v301
    %v304 = vadd.f32 %v239, %v302
    %s305 = scalar_lea.vmem [#allocation5], 432
    %v306 = vld [vmem:[%s305] sm:$0xff]
    %v307 = vld [vmem:[%s305 + $0x8] sm:$0xff]
    %v308 = vmul.f32 %v306, %v63
    %v309 = vmul.f32 %v307, %v62
    %s310 = scalar_lea.vmem [#allocation5], 448
    %v311 = vld [vmem:[%s310] sm:$0xff]
    %v312 = vld [vmem:[%s310 + $0x8] sm:$0xff]
    %v313 = vmul.f32 %v311, %v70
    %v314 = vmul.f32 %v312, %v69
    %v315 = vadd.f32 %v308, %v313
    %v316 = vadd.f32 %v309, %v314
    %s317 = scalar_lea.vmem [#allocation5], 464
    %v318 = vld [vmem:[%s317] sm:$0xff]
    %v319 = vld [vmem:[%s317 + $0x8] sm:$0xff]
    %v320 = vmul.f32 %v318, %v77
    %v321 = vmul.f32 %v319, %v76
    %v322 = vadd.f32 %v315, %v320
    %v323 = vadd.f32 %v316, %v321
    %s324 = scalar_lea.vmem [#allocation5], 480
    %v325 = vld [vmem:[%s324] sm:$0xff]
    %v326 = vld [vmem:[%s324 + $0x8] sm:$0xff]
    %v327 = vmul.f32 %v325, %v84
    %v328 = vmul.f32 %v326, %v83
    %v329 = vadd.f32 %v322, %v327
    %v330 = vadd.f32 %v323, %v328
    %s331 = scalar_lea.vmem [#allocation5], 496
    %v332 = vld [vmem:[%s331] sm:$0xff]
    %v333 = vld [vmem:[%s331 + $0x8] sm:$0xff]
    %v334 = vmul.f32 %v332, %v52
    %v335 = vmul.f32 %v333, %v53
    %v336 = vadd.f32 %v329, %v334
    %v337 = vadd.f32 %v330, %v335
    %s338 = scalar_lea.vmem [#allocation5], 512
    %v339 = vld [vmem:[%s338] sm:$0xff]
    %v340 = vld [vmem:[%s338 + $0x8] sm:$0xff]
    %v341 = vmul.f32 %v339, %v90
    %v342 = vmul.f32 %v340, %v91
    %v343 = vadd.f32 %v336, %v341
    %v344 = vadd.f32 %v337, %v342
    %s345 = scalar_lea.vmem [#allocation5], 528
    %v346 = vld [vmem:[%s345] sm:$0xff]
    %v347 = vld [vmem:[%s345 + $0x8] sm:$0xff]
    %v348 = vmul.f32 %v346, %v97
    %v349 = vmul.f32 %v347, %v98
    %v350 = vadd.f32 %v343, %v348
    %v351 = vadd.f32 %v344, %v349
    %s352 = scalar_lea.vmem [#allocation5], 544
    %v353 = vld [vmem:[%s352] sm:$0xff]
    %v354 = vld [vmem:[%s352 + $0x8] sm:$0xff]
    %v355 = vmul.f32 %v353, %v104
    %v356 = vmul.f32 %v354, %v105
    %v357 = vadd.f32 %v350, %v355
    %v358 = vadd.f32 %v351, %v356
    %s359 = scalar_lea.vmem [#allocation5], 560
    %v360 = vld [vmem:[%s359] sm:$0xff]
    %v361 = vld [vmem:[%s359 + $0x8] sm:$0xff]
    %v362 = vmul.f32 %v360, %v111
    %v363 = vmul.f32 %v361, %v112
    %v364 = vadd.f32 %v357, %v362
    %v365 = vadd.f32 %v358, %v363
    %v366 = vadd.f32 %v303, %v364
    %v367 = vadd.f32 %v304, %v365
    %s368 = scalar_lea.vmem [#allocation5], 576
    %v369 = vld [vmem:[%s368] sm:$0xff]
    %v370 = vld [vmem:[%s368 + $0x8] sm:$0xff]
    %v371 = vmul.f32 %v369, %v63
    %v372 = vmul.f32 %v370, %v62
    %s373 = scalar_lea.vmem [#allocation5], 592
    %v374 = vld [vmem:[%s373] sm:$0xff]
    %v375 = vld [vmem:[%s373 + $0x8] sm:$0xff]
    %v376 = vmul.f32 %v374, %v70
    %v377 = vmul.f32 %v375, %v69
    %v378 = vadd.f32 %v371, %v376
    %v379 = vadd.f32 %v372, %v377
    %s380 = scalar_lea.vmem [#allocation5], 608
    %v381 = vld [vmem:[%s380] sm:$0xff]
    %v382 = vld [vmem:[%s380 + $0x8] sm:$0xff]
    %v383 = vmul.f32 %v381, %v77
    %v384 = vmul.f32 %v382, %v76
    %v385 = vadd.f32 %v378, %v383
    %v386 = vadd.f32 %v379, %v384
    %s387 = scalar_lea.vmem [#allocation5], 624
    %v388 = vld [vmem:[%s387] sm:$0xff]
    %v389 = vld [vmem:[%s387 + $0x8] sm:$0xff]
    %v390 = vmul.f32 %v388, %v84
    %v391 = vmul.f32 %v389, %v83
    %v392 = vadd.f32 %v385, %v390
    %v393 = vadd.f32 %v386, %v391
    %s394 = scalar_lea.vmem [#allocation5], 640
    %v395 = vld [vmem:[%s394] sm:$0xff]
    %v396 = vld [vmem:[%s394 + $0x8] sm:$0xff]
    %v397 = vmul.f32 %v395, %v52
    %v398 = vmul.f32 %v396, %v53
    %v399 = vadd.f32 %v392, %v397
    %v400 = vadd.f32 %v393, %v398
    %s401 = scalar_lea.vmem [#allocation5], 656
    %v402 = vld [vmem:[%s401] sm:$0xff]
    %v403 = vld [vmem:[%s401 + $0x8] sm:$0xff]
    %v404 = vmul.f32 %v402, %v90
    %v405 = vmul.f32 %v403, %v91
    %v406 = vadd.f32 %v399, %v404
    %v407 = vadd.f32 %v400, %v405
    %s408 = scalar_lea.vmem [#allocation5], 672
    %v409 = vld [vmem:[%s408] sm:$0xff]
    %v410 = vld [vmem:[%s408 + $0x8] sm:$0xff]
    %v411 = vmul.f32 %v409, %v97
    %v412 = vmul.f32 %v410, %v98
    %v413 = vadd.f32 %v406, %v411
    %v414 = vadd.f32 %v407, %v412
    %s415 = scalar_lea.vmem [#allocation5], 688
    %v416 = vld [vmem:[%s415] sm:$0xff]
    %v417 = vld [vmem:[%s415 + $0x8] sm:$0xff]
    %v418 = vmul.f32 %v416, %v104
    %v419 = vmul.f32 %v417, %v105
    %v420 = vadd.f32 %v413, %v418
    %v421 = vadd.f32 %v414, %v419
    %s422 = scalar_lea.vmem [#allocation5], 704
    %v423 = vld [vmem:[%s422] sm:$0xff]
    %v424 = vld [vmem:[%s422 + $0x8] sm:$0xff]
    %v425 = vmul.f32 %v423, %v111
    %v426 = vmul.f32 %v424, %v112
    %v427 = vadd.f32 %v420, %v425
    %v428 = vadd.f32 %v421, %v426
    %v429 = vrot.slane %v427, 1
    %v430 = vrot.slane %v428, 1
    %v431 = vadd.f32 %v366, %v429
    %v432 = vadd.f32 %v367, %v430
    %s433 = scalar_lea.vmem [#allocation5], 720
    %v434 = vld [vmem:[%s433] sm:$0xff]
    %v435 = vld [vmem:[%s433 + $0x8] sm:$0xff]
    %v436 = vmul.f32 %v434, %v63
    %v437 = vmul.f32 %v435, %v62
    %s438 = scalar_lea.vmem [#allocation5], 736
    %v439 = vld [vmem:[%s438] sm:$0xff]
    %v440 = vld [vmem:[%s438 + $0x8] sm:$0xff]
    %v441 = vmul.f32 %v439, %v70
    %v442 = vmul.f32 %v440, %v69
    %v443 = vadd.f32 %v436, %v441
    %v444 = vadd.f32 %v437, %v442
    %s445 = scalar_lea.vmem [#allocation5], 752
    %v446 = vld [vmem:[%s445] sm:$0xff]
    %v447 = vld [vmem:[%s445 + $0x8] sm:$0xff]
    %v448 = vmul.f32 %v446, %v77
    %v449 = vmul.f32 %v447, %v76
    %v450 = vadd.f32 %v443, %v448
    %v451 = vadd.f32 %v444, %v449
    %s452 = scalar_lea.vmem [#allocation5], 768
    %v453 = vld [vmem:[%s452] sm:$0xff]
    %v454 = vld [vmem:[%s452 + $0x8] sm:$0xff]
    %v455 = vmul.f32 %v453, %v84
    %v456 = vmul.f32 %v454, %v83
    %v457 = vadd.f32 %v450, %v455
    %v458 = vadd.f32 %v451, %v456
    %s459 = scalar_lea.vmem [#allocation5], 784
    %v460 = vld [vmem:[%s459] sm:$0xff]
    %v461 = vld [vmem:[%s459 + $0x8] sm:$0xff]
    %v462 = vmul.f32 %v460, %v52
    %v463 = vmul.f32 %v461, %v53
    %v464 = vadd.f32 %v457, %v462
    %v465 = vadd.f32 %v458, %v463
    %s466 = scalar_lea.vmem [#allocation5], 800
    %v467 = vld [vmem:[%s466] sm:$0xff]
    %v468 = vld [vmem:[%s466 + $0x8] sm:$0xff]
    %v469 = vmul.f32 %v467, %v90
    %v470 = vmul.f32 %v468, %v91
    %v471 = vadd.f32 %v464, %v469
    %v472 = vadd.f32 %v465, %v470
    %s473 = scalar_lea.vmem [#allocation5], 816
    %v474 = vld [vmem:[%s473] sm:$0xff]
    %v475 = vld [vmem:[%s473 + $0x8] sm:$0xff]
    %v476 = vmul.f32 %v474, %v97
    %v477 = vmul.f32 %v475, %v98
    %v478 = vadd.f32 %v471, %v476
    %v479 = vadd.f32 %v472, %v477
    %s480 = scalar_lea.vmem [#allocation5], 832
    %v481 = vld [vmem:[%s480] sm:$0xff]
    %v482 = vld [vmem:[%s480 + $0x8] sm:$0xff]
    %v483 = vmul.f32 %v481, %v104
    %v484 = vmul.f32 %v482, %v105
    %v485 = vadd.f32 %v478, %v483
    %v486 = vadd.f32 %v479, %v484
    %s487 = scalar_lea.vmem [#allocation5], 848
    %v488 = vld [vmem:[%s487] sm:$0xff]
    %v489 = vld [vmem:[%s487 + $0x8] sm:$0xff]
    %v490 = vmul.f32 %v488, %v111
    %v491 = vmul.f32 %v489, %v112
    %v492 = vadd.f32 %v485, %v490
    %v493 = vadd.f32 %v486, %v491
    %v494 = vrot.slane %v492, 2
    %v495 = vrot.slane %v493, 2
    %v496 = vadd.f32 %v431, %v494
    %v497 = vadd.f32 %v432, %v495
    %s498 = scalar_lea.vmem [#allocation5], 864
    %v499 = vld [vmem:[%s498] sm:$0xff]
    %v500 = vld [vmem:[%s498 + $0x8] sm:$0xff]
    %v501 = vmul.f32 %v499, %v63
    %v502 = vmul.f32 %v500, %v62
    %s503 = scalar_lea.vmem [#allocation5], 880
    %v504 = vld [vmem:[%s503] sm:$0xff]
    %v505 = vld [vmem:[%s503 + $0x8] sm:$0xff]
    %v506 = vmul.f32 %v504, %v70
    %v507 = vmul.f32 %v505, %v69
    %v508 = vadd.f32 %v501, %v506
    %v509 = vadd.f32 %v502, %v507
    %s510 = scalar_lea.vmem [#allocation5], 896
    %v511 = vld [vmem:[%s510] sm:$0xff]
    %v512 = vld [vmem:[%s510 + $0x8] sm:$0xff]
    %v513 = vmul.f32 %v511, %v77
    %v514 = vmul.f32 %v512, %v76
    %v515 = vadd.f32 %v508, %v513
    %v516 = vadd.f32 %v509, %v514
    %s517 = scalar_lea.vmem [#allocation5], 912
    %v518 = vld [vmem:[%s517] sm:$0xff]
    %v519 = vld [vmem:[%s517 + $0x8] sm:$0xff]
    %v520 = vmul.f32 %v518, %v84
    %v521 = vmul.f32 %v519, %v83
    %v522 = vadd.f32 %v515, %v520
    %v523 = vadd.f32 %v516, %v521
    %s524 = scalar_lea.vmem [#allocation5], 928
    %v525 = vld [vmem:[%s524] sm:$0xff]
    %v526 = vld [vmem:[%s524 + $0x8] sm:$0xff]
    %v527 = vmul.f32 %v525, %v52
    %v528 = vmul.f32 %v526, %v53
    %v529 = vadd.f32 %v522, %v527
    %v530 = vadd.f32 %v523, %v528
    %s531 = scalar_lea.vmem [#allocation5], 944
    %v532 = vld [vmem:[%s531] sm:$0xff]
    %v533 = vld [vmem:[%s531 + $0x8] sm:$0xff]
    %v534 = vmul.f32 %v532, %v90
    %v535 = vmul.f32 %v533, %v91
    %v536 = vadd.f32 %v529, %v534
    %v537 = vadd.f32 %v530, %v535
    %s538 = scalar_lea.vmem [#allocation5], 960
    %v539 = vld [vmem:[%s538] sm:$0xff]
    %v540 = vld [vmem:[%s538 + $0x8] sm:$0xff]
    %v541 = vmul.f32 %v539, %v97
    %v542 = vmul.f32 %v540, %v98
    %v543 = vadd.f32 %v536, %v541
    %v544 = vadd.f32 %v537, %v542
    %s545 = scalar_lea.vmem [#allocation5], 976
    %v546 = vld [vmem:[%s545] sm:$0xff]
    %v547 = vld [vmem:[%s545 + $0x8] sm:$0xff]
    %v548 = vmul.f32 %v546, %v104
    %v549 = vmul.f32 %v547, %v105
    %v550 = vadd.f32 %v543, %v548
    %v551 = vadd.f32 %v544, %v549
    %s552 = scalar_lea.vmem [#allocation5], 992
    %v553 = vld [vmem:[%s552] sm:$0xff]
    %v554 = vld [vmem:[%s552 + $0x8] sm:$0xff]
    %v555 = vmul.f32 %v553, %v111
    %v556 = vmul.f32 %v554, %v112
    %v557 = vadd.f32 %v550, %v555
    %v558 = vadd.f32 %v551, %v556
    %v559 = vrot.slane %v557, 3
    %v560 = vrot.slane %v558, 3
    %v561 = vadd.f32 %v496, %v559
    %v562 = vadd.f32 %v497, %v560
    %564 = vset.pattern.permute.xlu0 0
    %565 = vperm.xlu0 %564, %v54
    %v566 = vpop.permute.xlu0 %565
    %v568 = vadd.f32 %v561, %v566
    %v569 = vadd.f32 %v562, %v566
    %v570 = vadd.f32 %v568, %v569
    %571 = vadd.xlane.f32.xlu0 %v570
    %v572 = vpop.xlane.xlu0 %571
    %v573 = vmul.f32 %v568, %v568
    %v574 = vmul.f32 %v569, %v569
    %v575 = vadd.f32 %v573, %v574
    %576 = vadd.xlane.f32.xlu0 %v575
    %v577 = vpop.xlane.xlu0 %576
    %v578 = vrot.slane %v572, 4
    %v579 = vadd.f32 %v572, %v578
    %v580 = vrot.slane %v577, 4
    %v581 = vadd.f32 %v577, %v580
    %v582 = vmul.f32 %v579, 0.001953125
    %v583 = vmul.f32 %v581, 0.001953125
    %v584 = vmul.f32 %v582, %v582
    %v585 = vsub.f32 %v583, %v584
    %v586 = vmax.f32 %v585, 0.0
    %v587 = vadd.f32 %v586, 1e-05
    %v588 = vrsqrt.pop %v587
    %590 = vrot.lane.b32.xlu0 %v588, 1
    %v591 = vpop.permute.xlu0 %590
    %v593 = vmul.f32 %v54, %v591
    %595 = vset.pattern.permute.xlu0 0
    %596 = vperm.xlu0 %595, %v582
    %v597 = vpop.permute.xlu0 %596
    %v599 = vsub.f32 %v568, %v597
    %v600 = vsub.f32 %v569, %v597
    %602 = vset.pattern.permute.xlu0 1
    %603 = vperm.xlu0 %602, %v593
    %v604 = vpop.permute.xlu0 %603
    %v606 = vmul.f32 %v599, %v604
    %v607 = vmul.f32 %v600, %v604
    %608 = vset.pattern.permute.xlu0 2
    %609 = vperm.xlu0 %608, %v54
    %v610 = vpop.permute.xlu0 %609
    %v612 = vadd.f32 %v606, %v610
    %v613 = vadd.f32 %v607, %v610
    %v614 = vmax.f32 %v612, 0.0
    %v615 = vmax.f32 %v613, 0.0
    %616 = vrot.lane.b32.xlu0 %v614, 17
    %v617 = vpop.permute.xlu0 %616
    %618 = vrot.lane.b32.xlu0 %v615, 17
    %v619 = vpop.permute.xlu0 %618
    %v620 = vsel %vm61, %v617, %v619
    %v621 = vsel %vm61, %v619, %v617
    %622 = vrot.lane.b32.xlu0 %v614, 16
    %v623 = vpop.permute.xlu0 %622
    %624 = vrot.lane.b32.xlu0 %v615, 16
    %v625 = vpop.permute.xlu0 %624
    %v626 = vsel %vm68, %v623, %v625
    %v627 = vsel %vm68, %v625, %v623
    %628 = vrot.lane.b32.xlu0 %v614, 15
    %v629 = vpop.permute.xlu0 %628
    %630 = vrot.lane.b32.xlu0 %v615, 15
    %v631 = vpop.permute.xlu0 %630
    %v632 = vsel %vm75, %v629, %v631
    %v633 = vsel %vm75, %v631, %v629
    %634 = vrot.lane.b32.xlu0 %v614, 1
    %v635 = vpop.permute.xlu0 %634
    %636 = vrot.lane.b32.xlu0 %v615, 1
    %v637 = vpop.permute.xlu0 %636
    %v638 = vsel %vm82, %v635, %v637
    %v639 = vsel %vm82, %v637, %v635
    %640 = vrot.lane.b32.xlu0 %v614, 127
    %v641 = vpop.permute.xlu0 %640
    %642 = vrot.lane.b32.xlu0 %v615, 127
    %v643 = vpop.permute.xlu0 %642
    %v644 = vsel %vm89, %v641, %v643
    %v645 = vsel %vm89, %v643, %v641
    %646 = vrot.lane.b32.xlu0 %v614, 113
    %v647 = vpop.permute.xlu0 %646
    %648 = vrot.lane.b32.xlu0 %v615, 113
    %v649 = vpop.permute.xlu0 %648
    %v650 = vsel %vm96, %v647, %v649
    %v651 = vsel %vm96, %v649, %v647
    %652 = vrot.lane.b32.xlu0 %v614, 112
    %v653 = vpop.permute.xlu0 %652
    %654 = vrot.lane.b32.xlu0 %v615, 112
    %v655 = vpop.permute.xlu0 %654
    %v656 = vsel %vm103, %v653, %v655
    %v657 = vsel %vm103, %v655, %v653
    %658 = vrot.lane.b32.xlu0 %v614, 111
    %v659 = vpop.permute.xlu0 %658
    %660 = vrot.lane.b32.xlu0 %v615, 111
    %v661 = vpop.permute.xlu0 %660
    %v662 = vsel %vm110, %v659, %v661
    %v663 = vsel %vm110, %v661, %v659
    %s664 = scalar_lea.vmem [#allocation5], 1008
    %v665 = vld [vmem:[%s664] sm:$0xff]
    %v666 = vld [vmem:[%s664 + $0x8] sm:$0xff]
    %v667 = vmul.f32 %v665, %v621
    %v668 = vmul.f32 %v666, %v620
    %s669 = scalar_lea.vmem [#allocation5], 1024
    %v670 = vld [vmem:[%s669] sm:$0xff]
    %v671 = vld [vmem:[%s669 + $0x8] sm:$0xff]
    %v672 = vmul.f32 %v670, %v627
    %v673 = vmul.f32 %v671, %v626
    %v674 = vadd.f32 %v667, %v672
    %v675 = vadd.f32 %v668, %v673
    %s676 = scalar_lea.vmem [#allocation5], 1040
    %v677 = vld [vmem:[%s676] sm:$0xff]
    %v678 = vld [vmem:[%s676 + $0x8] sm:$0xff]
    %v679 = vmul.f32 %v677, %v633
    %v680 = vmul.f32 %v678, %v632
    %v681 = vadd.f32 %v674, %v679
    %v682 = vadd.f32 %v675, %v680
    %s683 = scalar_lea.vmem [#allocation5], 1056
    %v684 = vld [vmem:[%s683] sm:$0xff]
    %v685 = vld [vmem:[%s683 + $0x8] sm:$0xff]
    %v686 = vmul.f32 %v684, %v639
    %v687 = vmul.f32 %v685, %v638
    %v688 = vadd.f32 %v681, %v686
    %v689 = vadd.f32 %v682, %v687
    %s690 = scalar_lea.vmem [#allocation5], 1072
    %v691 = vld [vmem:[%s690] sm:$0xff]
    %v692 = vld [vmem:[%s690 + $0x8] sm:$0xff]
    %v693 = vmul.f32 %v691, %v614
    %v694 = vmul.f32 %v692, %v615
    %v695 = vadd.f32 %v688, %v693
    %v696 = vadd.f32 %v689, %v694
    %s697 = scalar_lea.vmem [#allocation5], 1088
    %v698 = vld [vmem:[%s697] sm:$0xff]
    %v699 = vld [vmem:[%s697 + $0x8] sm:$0xff]
    %v700 = vmul.f32 %v698, %v644
    %v701 = vmul.f32 %v699, %v645
    %v702 = vadd.f32 %v695, %v700
    %v703 = vadd.f32 %v696, %v701
    %s704 = scalar_lea.vmem [#allocation5], 1104
    %v705 = vld [vmem:[%s704] sm:$0xff]
    %v706 = vld [vmem:[%s704 + $0x8] sm:$0xff]
    %v707 = vmul.f32 %v705, %v650
    %v708 = vmul.f32 %v706, %v651
    %v709 = vadd.f32 %v702, %v707
    %v710 = vadd.f32 %v703, %v708
    %s711 = scalar_lea.vmem [#allocation5], 1120
    %v712 = vld [vmem:[%s711] sm:$0xff]
    %v713 = vld [vmem:[%s711 + $0x8] sm:$0xff]
    %v714 = vmul.f32 %v712, %v656
    %v715 = vmul.f32 %v713, %v657
    %v716 = vadd.f32 %v709, %v714
    %v717 = vadd.f32 %v710, %v715
    %s718 = scalar_lea.vmem [#allocation5], 1136
    %v719 = vld [vmem:[%s718] sm:$0xff]
    %v720 = vld [vmem:[%s718 + $0x8] sm:$0xff]
    %v721 = vmul.f32 %v719, %v662
    %v722 = vmul.f32 %v720, %v663
    %v723 = vadd.f32 %v716, %v721
    %v724 = vadd.f32 %v717, %v722
    %v725 = vrot.slane %v723, 5
    %v726 = vrot.slane %v724, 5
    %s727 = scalar_lea.vmem [#allocation5], 1152
    %v728 = vld [vmem:[%s727] sm:$0xff]
    %v729 = vld [vmem:[%s727 + $0x8] sm:$0xff]
    %v730 = vmul.f32 %v728, %v621
    %v731 = vmul.f32 %v729, %v620
    %s732 = scalar_lea.vmem [#allocation5], 1168
    %v733 = vld [vmem:[%s732] sm:$0xff]
    %v734 = vld [vmem:[%s732 + $0x8] sm:$0xff]
    %v735 = vmul.f32 %v733, %v627
    %v736 = vmul.f32 %v734, %v626
    %v737 = vadd.f32 %v730, %v735
    %v738 = vadd.f32 %v731, %v736
    %s739 = scalar_lea.vmem [#allocation5], 1184
    %v740 = vld [vmem:[%s739] sm:$0xff]
    %v741 = vld [vmem:[%s739 + $0x8] sm:$0xff]
    %v742 = vmul.f32 %v740, %v633
    %v743 = vmul.f32 %v741, %v632
    %v744 = vadd.f32 %v737, %v742
    %v745 = vadd.f32 %v738, %v743
    %s746 = scalar_lea.vmem [#allocation5], 1200
    %v747 = vld [vmem:[%s746] sm:$0xff]
    %v748 = vld [vmem:[%s746 + $0x8] sm:$0xff]
    %v749 = vmul.f32 %v747, %v639
    %v750 = vmul.f32 %v748, %v638
    %v751 = vadd.f32 %v744, %v749
    %v752 = vadd.f32 %v745, %v750
    %s753 = scalar_lea.vmem [#allocation5], 1216
    %v754 = vld [vmem:[%s753] sm:$0xff]
    %v755 = vld [vmem:[%s753 + $0x8] sm:$0xff]
    %v756 = vmul.f32 %v754, %v614
    %v757 = vmul.f32 %v755, %v615
    %v758 = vadd.f32 %v751, %v756
    %v759 = vadd.f32 %v752, %v757
    %s760 = scalar_lea.vmem [#allocation5], 1232
    %v761 = vld [vmem:[%s760] sm:$0xff]
    %v762 = vld [vmem:[%s760 + $0x8] sm:$0xff]
    %v763 = vmul.f32 %v761, %v644
    %v764 = vmul.f32 %v762, %v645
    %v765 = vadd.f32 %v758, %v763
    %v766 = vadd.f32 %v759, %v764
    %s767 = scalar_lea.vmem [#allocation5], 1248
    %v768 = vld [vmem:[%s767] sm:$0xff]
    %v769 = vld [vmem:[%s767 + $0x8] sm:$0xff]
    %v770 = vmul.f32 %v768, %v650
    %v771 = vmul.f32 %v769, %v651
    %v772 = vadd.f32 %v765, %v770
    %v773 = vadd.f32 %v766, %v771
    %s774 = scalar_lea.vmem [#allocation5], 1264
    %v775 = vld [vmem:[%s774] sm:$0xff]
    %v776 = vld [vmem:[%s774 + $0x8] sm:$0xff]
    %v777 = vmul.f32 %v775, %v656
    %v778 = vmul.f32 %v776, %v657
    %v779 = vadd.f32 %v772, %v777
    %v780 = vadd.f32 %v773, %v778
    %s781 = scalar_lea.vmem [#allocation5], 1280
    %v782 = vld [vmem:[%s781] sm:$0xff]
    %v783 = vld [vmem:[%s781 + $0x8] sm:$0xff]
    %v784 = vmul.f32 %v782, %v662
    %v785 = vmul.f32 %v783, %v663
    %v786 = vadd.f32 %v779, %v784
    %v787 = vadd.f32 %v780, %v785
    %v788 = vrot.slane %v786, 6
    %v789 = vrot.slane %v787, 6
    %v790 = vadd.f32 %v725, %v788
    %v791 = vadd.f32 %v726, %v789
    %s792 = scalar_lea.vmem [#allocation5], 1296
    %v793 = vld [vmem:[%s792] sm:$0xff]
    %v794 = vld [vmem:[%s792 + $0x8] sm:$0xff]
    %v795 = vmul.f32 %v793, %v621
    %v796 = vmul.f32 %v794, %v620
    %s797 = scalar_lea.vmem [#allocation5], 1312
    %v798 = vld [vmem:[%s797] sm:$0xff]
    %v799 = vld [vmem:[%s797 + $0x8] sm:$0xff]
    %v800 = vmul.f32 %v798, %v627
    %v801 = vmul.f32 %v799, %v626
    %v802 = vadd.f32 %v795, %v800
    %v803 = vadd.f32 %v796, %v801
    %s804 = scalar_lea.vmem [#allocation5], 1328
    %v805 = vld [vmem:[%s804] sm:$0xff]
    %v806 = vld [vmem:[%s804 + $0x8] sm:$0xff]
    %v807 = vmul.f32 %v805, %v633
    %v808 = vmul.f32 %v806, %v632
    %v809 = vadd.f32 %v802, %v807
    %v810 = vadd.f32 %v803, %v808
    %s811 = scalar_lea.vmem [#allocation5], 1344
    %v812 = vld [vmem:[%s811] sm:$0xff]
    %v813 = vld [vmem:[%s811 + $0x8] sm:$0xff]
    %v814 = vmul.f32 %v812, %v639
    %v815 = vmul.f32 %v813, %v638
    %v816 = vadd.f32 %v809, %v814
    %v817 = vadd.f32 %v810, %v815
    %s818 = scalar_lea.vmem [#allocation5], 1360
    %v819 = vld [vmem:[%s818] sm:$0xff]
    %v820 = vld [vmem:[%s818 + $0x8] sm:$0xff]
    %v821 = vmul.f32 %v819, %v614
    %v822 = vmul.f32 %v820, %v615
    %v823 = vadd.f32 %v816, %v821
    %v824 = vadd.f32 %v817, %v822
    %s825 = scalar_lea.vmem [#allocation5], 1376
    %v826 = vld [vmem:[%s825] sm:$0xff]
    %v827 = vld [vmem:[%s825 + $0x8] sm:$0xff]
    %v828 = vmul.f32 %v826, %v644
    %v829 = vmul.f32 %v827, %v645
    %v830 = vadd.f32 %v823, %v828
    %v831 = vadd.f32 %v824, %v829
    %s832 = scalar_lea.vmem [#allocation5], 1392
    %v833 = vld [vmem:[%s832] sm:$0xff]
    %v834 = vld [vmem:[%s832 + $0x8] sm:$0xff]
    %v835 = vmul.f32 %v833, %v650
    %v836 = vmul.f32 %v834, %v651
    %v837 = vadd.f32 %v830, %v835
    %v838 = vadd.f32 %v831, %v836
    %s839 = scalar_lea.vmem [#allocation5], 1408
    %v840 = vld [vmem:[%s839] sm:$0xff]
    %v841 = vld [vmem:[%s839 + $0x8] sm:$0xff]
    %v842 = vmul.f32 %v840, %v656
    %v843 = vmul.f32 %v841, %v657
    %v844 = vadd.f32 %v837, %v842
    %v845 = vadd.f32 %v838, %v843
    %s846 = scalar_lea.vmem [#allocation5], 1424
    %v847 = vld [vmem:[%s846] sm:$0xff]
    %v848 = vld [vmem:[%s846 + $0x8] sm:$0xff]
    %v849 = vmul.f32 %v847, %v662
    %v850 = vmul.f32 %v848, %v663
    %v851 = vadd.f32 %v844, %v849
    %v852 = vadd.f32 %v845, %v850
    %v853 = vrot.slane %v851, 7
    %v854 = vrot.slane %v852, 7
    %v855 = vadd.f32 %v790, %v853
    %v856 = vadd.f32 %v791, %v854
    %s857 = scalar_lea.vmem [#allocation5], 1440
    %v858 = vld [vmem:[%s857] sm:$0xff]
    %v859 = vld [vmem:[%s857 + $0x8] sm:$0xff]
    %v860 = vmul.f32 %v858, %v621
    %v861 = vmul.f32 %v859, %v620
    %s862 = scalar_lea.vmem [#allocation5], 1456
    %v863 = vld [vmem:[%s862] sm:$0xff]
    %v864 = vld [vmem:[%s862 + $0x8] sm:$0xff]
    %v865 = vmul.f32 %v863, %v627
    %v866 = vmul.f32 %v864, %v626
    %v867 = vadd.f32 %v860, %v865
    %v868 = vadd.f32 %v861, %v866
    %s869 = scalar_lea.vmem [#allocation5], 1472
    %v870 = vld [vmem:[%s869] sm:$0xff]
    %v871 = vld [vmem:[%s869 + $0x8] sm:$0xff]
    %v872 = vmul.f32 %v870, %v633
    %v873 = vmul.f32 %v871, %v632
    %v874 = vadd.f32 %v867, %v872
    %v875 = vadd.f32 %v868, %v873
    %s876 = scalar_lea.vmem [#allocation5], 1488
    %v877 = vld [vmem:[%s876] sm:$0xff]
    %v878 = vld [vmem:[%s876 + $0x8] sm:$0xff]
    %v879 = vmul.f32 %v877, %v639
    %v880 = vmul.f32 %v878, %v638
    %v881 = vadd.f32 %v874, %v879
    %v882 = vadd.f32 %v875, %v880
    %s883 = scalar_lea.vmem [#allocation5], 1504
    %v884 = vld [vmem:[%s883] sm:$0xff]
    %v885 = vld [vmem:[%s883 + $0x8] sm:$0xff]
    %v886 = vmul.f32 %v884, %v614
    %v887 = vmul.f32 %v885, %v615
    %v888 = vadd.f32 %v881, %v886
    %v889 = vadd.f32 %v882, %v887
    %s890 = scalar_lea.vmem [#allocation5], 1520
    %v891 = vld [vmem:[%s890] sm:$0xff]
    %v892 = vld [vmem:[%s890 + $0x8] sm:$0xff]
    %v893 = vmul.f32 %v891, %v644
    %v894 = vmul.f32 %v892, %v645
    %v895 = vadd.f32 %v888, %v893
    %v896 = vadd.f32 %v889, %v894
    %s897 = scalar_lea.vmem [#allocation5], 1536
    %v898 = vld [vmem:[%s897] sm:$0xff]
    %v899 = vld [vmem:[%s897 + $0x8] sm:$0xff]
    %v900 = vmul.f32 %v898, %v650
    %v901 = vmul.f32 %v899, %v651
    %v902 = vadd.f32 %v895, %v900
    %v903 = vadd.f32 %v896, %v901
    %s904 = scalar_lea.vmem [#allocation5], 1552
    %v905 = vld [vmem:[%s904] sm:$0xff]
    %v906 = vld [vmem:[%s904 + $0x8] sm:$0xff]
    %v907 = vmul.f32 %v905, %v656
    %v908 = vmul.f32 %v906, %v657
    %v909 = vadd.f32 %v902, %v907
    %v910 = vadd.f32 %v903, %v908
    %s911 = scalar_lea.vmem [#allocation5], 1568
    %v912 = vld [vmem:[%s911] sm:$0xff]
    %v913 = vld [vmem:[%s911 + $0x8] sm:$0xff]
    %v914 = vmul.f32 %v912, %v662
    %v915 = vmul.f32 %v913, %v663
    %v916 = vadd.f32 %v909, %v914
    %v917 = vadd.f32 %v910, %v915
    %v918 = vadd.f32 %v855, %v916
    %v919 = vadd.f32 %v856, %v917
    %s920 = scalar_lea.vmem [#allocation5], 1584
    %v921 = vld [vmem:[%s920] sm:$0xff]
    %v922 = vld [vmem:[%s920 + $0x8] sm:$0xff]
    %v923 = vmul.f32 %v921, %v621
    %v924 = vmul.f32 %v922, %v620
    %s925 = scalar_lea.vmem [#allocation5], 1600
    %v926 = vld [vmem:[%s925] sm:$0xff]
    %v927 = vld [vmem:[%s925 + $0x8] sm:$0xff]
    %v928 = vmul.f32 %v926, %v627
    %v929 = vmul.f32 %v927, %v626
    %v930 = vadd.f32 %v923, %v928
    %v931 = vadd.f32 %v924, %v929
    %s932 = scalar_lea.vmem [#allocation5], 1616
    %v933 = vld [vmem:[%s932] sm:$0xff]
    %v934 = vld [vmem:[%s932 + $0x8] sm:$0xff]
    %v935 = vmul.f32 %v933, %v633
    %v936 = vmul.f32 %v934, %v632
    %v937 = vadd.f32 %v930, %v935
    %v938 = vadd.f32 %v931, %v936
    %s939 = scalar_lea.vmem [#allocation5], 1632
    %v940 = vld [vmem:[%s939] sm:$0xff]
    %v941 = vld [vmem:[%s939 + $0x8] sm:$0xff]
    %v942 = vmul.f32 %v940, %v639
    %v943 = vmul.f32 %v941, %v638
    %v944 = vadd.f32 %v937, %v942
    %v945 = vadd.f32 %v938, %v943
    %s946 = scalar_lea.vmem [#allocation5], 1648
    %v947 = vld [vmem:[%s946] sm:$0xff]
    %v948 = vld [vmem:[%s946 + $0x8] sm:$0xff]
    %v949 = vmul.f32 %v947, %v614
    %v950 = vmul.f32 %v948, %v615
    %v951 = vadd.f32 %v944, %v949
    %v952 = vadd.f32 %v945, %v950
    %s953 = scalar_lea.vmem [#allocation5], 1664
    %v954 = vld [vmem:[%s953] sm:$0xff]
    %v955 = vld [vmem:[%s953 + $0x8] sm:$0xff]
    %v956 = vmul.f32 %v954, %v644
    %v957 = vmul.f32 %v955, %v645
    %v958 = vadd.f32 %v951, %v956
    %v959 = vadd.f32 %v952, %v957
    %s960 = scalar_lea.vmem [#allocation5], 1680
    %v961 = vld [vmem:[%s960] sm:$0xff]
    %v962 = vld [vmem:[%s960 + $0x8] sm:$0xff]
    %v963 = vmul.f32 %v961, %v650
    %v964 = vmul.f32 %v962, %v651
    %v965 = vadd.f32 %v958, %v963
    %v966 = vadd.f32 %v959, %v964
    %s967 = scalar_lea.vmem [#allocation5], 1696
    %v968 = vld [vmem:[%s967] sm:$0xff]
    %v969 = vld [vmem:[%s967 + $0x8] sm:$0xff]
    %v970 = vmul.f32 %v968, %v656
    %v971 = vmul.f32 %v969, %v657
    %v972 = vadd.f32 %v965, %v970
    %v973 = vadd.f32 %v966, %v971
    %s974 = scalar_lea.vmem [#allocation5], 1712
    %v975 = vld [vmem:[%s974] sm:$0xff]
    %v976 = vld [vmem:[%s974 + $0x8] sm:$0xff]
    %v977 = vmul.f32 %v975, %v662
    %v978 = vmul.f32 %v976, %v663
    %v979 = vadd.f32 %v972, %v977
    %v980 = vadd.f32 %v973, %v978
    %v981 = vrot.slane %v979, 1
    %v982 = vrot.slane %v980, 1
    %v983 = vadd.f32 %v918, %v981
    %v984 = vadd.f32 %v919, %v982
    %s985 = scalar_lea.vmem [#allocation5], 1728
    %v986 = vld [vmem:[%s985] sm:$0xff]
    %v987 = vld [vmem:[%s985 + $0x8] sm:$0xff]
    %v988 = vmul.f32 %v986, %v621
    %v989 = vmul.f32 %v987, %v620
    %s990 = scalar_lea.vmem [#allocation5], 1744
    %v991 = vld [vmem:[%s990] sm:$0xff]
    %v992 = vld [vmem:[%s990 + $0x8] sm:$0xff]
    %v993 = vmul.f32 %v991, %v627
    %v994 = vmul.f32 %v992, %v626
    %v995 = vadd.f32 %v988, %v993
    %v996 = vadd.f32 %v989, %v994
    %s997 = scalar_lea.vmem [#allocation5], 1760
    %v998 = vld [vmem:[%s997] sm:$0xff]
    %v999 = vld [vmem:[%s997 + $0x8] sm:$0xff]
    %v1000 = vmul.f32 %v998, %v633
    %v1001 = vmul.f32 %v999, %v632
    %v1002 = vadd.f32 %v995, %v1000
    %v1003 = vadd.f32 %v996, %v1001
    %s1004 = scalar_lea.vmem [#allocation5], 1776
    %v1005 = vld [vmem:[%s1004] sm:$0xff]
    %v1006 = vld [vmem:[%s1004 + $0x8] sm:$0xff]
    %v1007 = vmul.f32 %v1005, %v639
    %v1008 = vmul.f32 %v1006, %v638
    %v1009 = vadd.f32 %v1002, %v1007
    %v1010 = vadd.f32 %v1003, %v1008
    %s1011 = scalar_lea.vmem [#allocation5], 1792
    %v1012 = vld [vmem:[%s1011] sm:$0xff]
    %v1013 = vld [vmem:[%s1011 + $0x8] sm:$0xff]
    %v1014 = vmul.f32 %v1012, %v614
    %v1015 = vmul.f32 %v1013, %v615
    %v1016 = vadd.f32 %v1009, %v1014
    %v1017 = vadd.f32 %v1010, %v1015
    %s1018 = scalar_lea.vmem [#allocation5], 1808
    %v1019 = vld [vmem:[%s1018] sm:$0xff]
    %v1020 = vld [vmem:[%s1018 + $0x8] sm:$0xff]
    %v1021 = vmul.f32 %v1019, %v644
    %v1022 = vmul.f32 %v1020, %v645
    %v1023 = vadd.f32 %v1016, %v1021
    %v1024 = vadd.f32 %v1017, %v1022
    %s1025 = scalar_lea.vmem [#allocation5], 1824
    %v1026 = vld [vmem:[%s1025] sm:$0xff]
    %v1027 = vld [vmem:[%s1025 + $0x8] sm:$0xff]
    %v1028 = vmul.f32 %v1026, %v650
    %v1029 = vmul.f32 %v1027, %v651
    %v1030 = vadd.f32 %v1023, %v1028
    %v1031 = vadd.f32 %v1024, %v1029
    %s1032 = scalar_lea.vmem [#allocation5], 1840
    %v1033 = vld [vmem:[%s1032] sm:$0xff]
    %v1034 = vld [vmem:[%s1032 + $0x8] sm:$0xff]
    %v1035 = vmul.f32 %v1033, %v656
    %v1036 = vmul.f32 %v1034, %v657
    %v1037 = vadd.f32 %v1030, %v1035
    %v1038 = vadd.f32 %v1031, %v1036
    %s1039 = scalar_lea.vmem [#allocation5], 1856
    %v1040 = vld [vmem:[%s1039] sm:$0xff]
    %v1041 = vld [vmem:[%s1039 + $0x8] sm:$0xff]
    %v1042 = vmul.f32 %v1040, %v662
    %v1043 = vmul.f32 %v1041, %v663
    %v1044 = vadd.f32 %v1037, %v1042
    %v1045 = vadd.f32 %v1038, %v1043
    %v1046 = vrot.slane %v1044, 2
    %v1047 = vrot.slane %v1045, 2
    %v1048 = vadd.f32 %v983, %v1046
    %v1049 = vadd.f32 %v984, %v1047
    %s1050 = scalar_lea.vmem [#allocation5], 1872
    %v1051 = vld [vmem:[%s1050] sm:$0xff]
    %v1052 = vld [vmem:[%s1050 + $0x8] sm:$0xff]
    %v1053 = vmul.f32 %v1051, %v621
    %v1054 = vmul.f32 %v1052, %v620
    %s1055 = scalar_lea.vmem [#allocation5], 1888
    %v1056 = vld [vmem:[%s1055] sm:$0xff]
    %v1057 = vld [vmem:[%s1055 + $0x8] sm:$0xff]
    %v1058 = vmul.f32 %v1056, %v627
    %v1059 = vmul.f32 %v1057, %v626
    %v1060 = vadd.f32 %v1053, %v1058
    %v1061 = vadd.f32 %v1054, %v1059
    %s1062 = scalar_lea.vmem [#allocation5], 1904
    %v1063 = vld [vmem:[%s1062] sm:$0xff]
    %v1064 = vld [vmem:[%s1062 + $0x8] sm:$0xff]
    %v1065 = vmul.f32 %v1063, %v633
    %v1066 = vmul.f32 %v1064, %v632
    %v1067 = vadd.f32 %v1060, %v1065
    %v1068 = vadd.f32 %v1061, %v1066
    %s1069 = scalar_lea.vmem [#allocation5], 1920
    %v1070 = vld [vmem:[%s1069] sm:$0xff]
    %v1071 = vld [vmem:[%s1069 + $0x8] sm:$0xff]
    %v1072 = vmul.f32 %v1070, %v639
    %v1073 = vmul.f32 %v1071, %v638
    %v1074 = vadd.f32 %v1067, %v1072
    %v1075 = vadd.f32 %v1068, %v1073
    %s1076 = scalar_lea.vmem [#allocation5], 1936
    %v1077 = vld [vmem:[%s1076] sm:$0xff]
    %v1078 = vld [vmem:[%s1076 + $0x8] sm:$0xff]
    %v1079 = vmul.f32 %v1077, %v614
    %v1080 = vmul.f32 %v1078, %v615
    %v1081 = vadd.f32 %v1074, %v1079
    %v1082 = vadd.f32 %v1075, %v1080
    %s1083 = scalar_lea.vmem [#allocation5], 1952
    %v1084 = vld [vmem:[%s1083] sm:$0xff]
    %v1085 = vld [vmem:[%s1083 + $0x8] sm:$0xff]
    %v1086 = vmul.f32 %v1084, %v644
    %v1087 = vmul.f32 %v1085, %v645
    %v1088 = vadd.f32 %v1081, %v1086
    %v1089 = vadd.f32 %v1082, %v1087
    %s1090 = scalar_lea.vmem [#allocation5], 1968
    %v1091 = vld [vmem:[%s1090] sm:$0xff]
    %v1092 = vld [vmem:[%s1090 + $0x8] sm:$0xff]
    %v1093 = vmul.f32 %v1091, %v650
    %v1094 = vmul.f32 %v1092, %v651
    %v1095 = vadd.f32 %v1088, %v1093
    %v1096 = vadd.f32 %v1089, %v1094
    %s1097 = scalar_lea.vmem [#allocation5], 1984
    %v1098 = vld [vmem:[%s1097] sm:$0xff]
    %v1099 = vld [vmem:[%s1097 + $0x8] sm:$0xff]
    %v1100 = vmul.f32 %v1098, %v656
    %v1101 = vmul.f32 %v1099, %v657
    %v1102 = vadd.f32 %v1095, %v1100
    %v1103 = vadd.f32 %v1096, %v1101
    %s1104 = scalar_lea.vmem [#allocation5], 2000
    %v1105 = vld [vmem:[%s1104] sm:$0xff]
    %v1106 = vld [vmem:[%s1104 + $0x8] sm:$0xff]
    %v1107 = vmul.f32 %v1105, %v662
    %v1108 = vmul.f32 %v1106, %v663
    %v1109 = vadd.f32 %v1102, %v1107
    %v1110 = vadd.f32 %v1103, %v1108
    %v1111 = vrot.slane %v1109, 3
    %v1112 = vrot.slane %v1110, 3
    %v1113 = vadd.f32 %v1048, %v1111
    %v1114 = vadd.f32 %v1049, %v1112
    %1115 = vset.pattern.permute.xlu0 3
    %1116 = vperm.xlu0 %1115, %v54
    %v1117 = vpop.permute.xlu0 %1116
    %v1119 = vadd.f32 %v1113, %v1117
    %v1120 = vadd.f32 %v1114, %v1117
    %v1121 = vadd.f32 %v1119, %v1120
    %1122 = vadd.xlane.f32.xlu0 %v1121
    %v1123 = vpop.xlane.xlu0 %1122
    %v1124 = vmul.f32 %v1119, %v1119
    %v1125 = vmul.f32 %v1120, %v1120
    %v1126 = vadd.f32 %v1124, %v1125
    %1127 = vadd.xlane.f32.xlu0 %v1126
    %v1128 = vpop.xlane.xlu0 %1127
    %v1129 = vrot.slane %v1123, 4
    %v1130 = vadd.f32 %v1123, %v1129
    %v1131 = vrot.slane %v1128, 4
    %v1132 = vadd.f32 %v1128, %v1131
    %v1133 = vmul.f32 %v1130, 0.001953125
    %v1134 = vmul.f32 %v1132, 0.001953125
    %v1135 = vmul.f32 %v1133, %v1133
    %v1136 = vsub.f32 %v1134, %v1135
    %v1137 = vmax.f32 %v1136, 0.0
    %v1138 = vadd.f32 %v1137, 1e-05
    %v1139 = vrsqrt.pop %v1138
    %1141 = vrot.lane.b32.xlu0 %v1139, 4
    %v1142 = vpop.permute.xlu0 %1141
    %v1144 = vmul.f32 %v54, %v1142
    %1146 = vset.pattern.permute.xlu0 0
    %1147 = vperm.xlu0 %1146, %v1133
    %v1148 = vpop.permute.xlu0 %1147
    %v1150 = vsub.f32 %v1119, %v1148
    %v1151 = vsub.f32 %v1120, %v1148
    %1153 = vset.pattern.permute.xlu0 4
    %1154 = vperm.xlu0 %1153, %v1144
    %v1155 = vpop.permute.xlu0 %1154
    %v1157 = vmul.f32 %v1150, %v1155
    %v1158 = vmul.f32 %v1151, %v1155
    %1159 = vset.pattern.permute.xlu0 5
    %1160 = vperm.xlu0 %1159, %v54
    %v1161 = vpop.permute.xlu0 %1160
    %v1163 = vadd.f32 %v1157, %v1161
    %v1164 = vadd.f32 %v1158, %v1161
    %v1165 = vmax.f32 %v1163, 0.0
    %v1166 = vmax.f32 %v1164, 0.0
    %v1167 = vadd.f32 %v52, %v1165
    %v1168 = vadd.f32 %v53, %v1166
    %v1169 = vmax.f32 %v1167, 0.0
    %v1170 = vmax.f32 %v1168, 0.0
    %1171 = vst [vmem:[#allocation8] sm:$0xff] %v1169
    %1172 = vst [vmem:[#allocation8 + $0x8] sm:$0xff] %v1170
    // Predicated region
    $region26: #{tpu_custom_call.1} parent=1 // pred_check
      _
    $region27: #{tpu_custom_call.1} parent=1 // pred_check_branch
      %1174 = sbr.rel (0) target = $region29
    $region28: #{tpu_custom_call.1} parent=1 // pred_region
      %s1176 = ssub.s32 256, 256
      %1177 = vsyncadd [#allocation4], %s1176
      %s1179 = sshll.u32 [#allocation8], 4
      %s1180 = int_to_ptr.vmem [resolvable:$true] %s1179
      %1182 = dma.vmem_to_hbm [thread:$0]  %s1180, 256, %s3, [#allocation4]
    $region29: #{tpu_custom_call.1} parent=1 // pred_fallthru
      _
    // Predicated region
    $region30: #{tpu_custom_call.1} parent=1 // pred_check
      _
    $region31: #{tpu_custom_call.1} parent=1 // pred_check_branch
      %1184 = sbr.rel (0) target = $region33
    $region32: #{tpu_custom_call.1} parent=1 // pred_region
      %1185 = dma.done [#allocation4], 256
    $region33: #{tpu_custom_call.1} parent=1 // pred_fallthru
      _
    %1186 = vsyncpa [#allocation3], 1
    %1187 = vsyncpa [#allocation6], 1
    %1188 = vsyncpa [#allocation4], 1

</llo_original>
